<compile_context>
chip_gen: v6e
topology: v6e:2x2x1
jax: 0.10.0
libtpu: 0.0.40
codegen_flags: <defaults>
</compile_context>

<pallas_src>
import functools
import math

import jax
import jax.numpy as jnp
from jax import lax
from jax.experimental import pallas as pl
from jax.experimental.pallas import tpu as pltpu

# ----------------------- model config (small, synthetic) --------------------
VOCAB = 128
HIDDEN = 32
N_LAYERS = 2
N_HEADS = 2
HEAD_DIM = HIDDEN // N_HEADS
INTERMEDIATE = 64
MAX_POS = 16
TYPE_VOCAB = 2
LN_EPS = 1e-12


# ------------------------------ in-kernel math -------------------------------
def _gelu(x):
    # HF BERT default hidden_act="gelu" (erf-based, VPU polynomial).
    # TODO(synk): jax.nn.gelu(approximate=True) routes to the EUP slot and is
    # nearly free at real sizes, but deviates from the HF erf reference.
    return 0.5 * x * (1.0 + lax.erf(x / math.sqrt(2.0)))


def _layernorm(h, gamma, beta):
    # f32 math (eps=1e-12 is meaningless in bf16).
    mu = jnp.mean(h, axis=-1, keepdims=True)
    var = jnp.mean(jnp.square(h - mu), axis=-1, keepdims=True)
    return (h - mu) * lax.rsqrt(var + LN_EPS) * gamma + beta


# --------------------------- fully fused BERT kernel -------------------------
def _bert_kernel(emb_ref, mask_ref, embg_ref, embb_ref,
                 wqkv_ref, bqkv_ref, wo_ref, bo_ref, ln1g_ref, ln1b_ref,
                 wi_ref, bi_ref, wo2_ref, bo2_ref, ln2g_ref, ln2b_ref,
                 hdw_ref, hdb_ref, hlng_ref, hlnb_ref, dec_ref, decb_ref,
                 logits_ref, x_sc,
                 *, batch, seq, n_heads, head_dim):
    """One grid step == one transformer layer; hidden state carried in x_sc.

    l == 0           : fuse the embedding LayerNorm.
    every l          : QKV matmul, batched all-head attention, output proj,
                       residual LN, FFN, residual LN.
    l == L-1         : fuse the MLM head and write the [M, V] logits.
    """
    hidden = n_heads * head_dim
    rows = batch * seq
    layer = pl.program_id(0)

    # Layer 0: embedding LayerNorm into the resident VMEM carry.
    @pl.when(layer == 0)
    def _():
        x_sc[...] = _layernorm(emb_ref[...], embg_ref[...], embb_ref[...])

    x = x_sc[...]                                    # [M, H] f32, VMEM-resident
    x_bf = x.astype(jnp.bfloat16)

    # ---- fused QKV projection: one [H, 3H] bf16 matmul, f32 accumulation ----
    qkv = jnp.dot(x_bf, wqkv_ref[...],
                  preferred_element_type=jnp.float32) + bqkv_ref[...]  # [M, 3H]

    scale = 1.0 / math.sqrt(head_dim)
    q2 = qkv[:, :hidden] * scale                     # fold 1/sqrt(Dh) into q
    k2 = qkv[:, hidden:2 * hidden]
    v2 = qkv[:, 2 * hidden:]

    def split_heads(x2d):
        # [M, H] -> [nH*B, S, Dh]; heads folded onto the leading (batch) axis
        # (head-major), leading-dim reshapes only — no lane-layout shuffles.
        return jnp.concatenate(
            [x2d[:, h * head_dim:(h + 1) * head_dim].reshape(batch, seq, head_dim)
             for h in range(n_heads)], axis=0)

    qh = split_heads(q2).astype(jnp.bfloat16)
    kh = split_heads(k2).astype(jnp.bfloat16)
    vh = split_heads(v2).astype(jnp.bfloat16)

    # ---- batched attention for ALL heads (one einsum pair, f32 softmax) ----
    s = jnp.einsum("bqd,bkd->bqk", qh, kh,
                   preferred_element_type=jnp.float32)          # [nH*B, S, S]
    s = s + mask_ref[...][:, None, :]                           # additive mask
    s = s - jnp.max(s, axis=-1, keepdims=True)
    p = jnp.exp(s)
    p = p * pl.reciprocal(jnp.sum(p, axis=-1, keepdims=True), approx=True)
    ctx = jnp.einsum("bqk,bkd->bqd", p.astype(jnp.bfloat16), vh,
                     preferred_element_type=jnp.float32)        # [nH*B, S, Dh]

    # Concatenate heads back on the lane axis -> ONE [M,H]@[H,H] output proj.
    ctx2 = jnp.concatenate(
        [ctx[h * batch:(h + 1) * batch].reshape(rows, head_dim)
         for h in range(n_heads)], axis=-1)                     # [M, H]
    attn = jnp.dot(ctx2.astype(jnp.bfloat16), wo_ref[...],
                   preferred_element_type=jnp.float32) + bo_ref[...]

    h1 = _layernorm(attn + x, ln1g_ref[...], ln1b_ref[...])

    # ---- FFN: wi + gelu + wo2 + residual LayerNorm, fused ----
    inter = jnp.dot(h1.astype(jnp.bfloat16), wi_ref[...],
                    preferred_element_type=jnp.float32) + bi_ref[...]
    inter = _gelu(inter)
    ffn = jnp.dot(inter.astype(jnp.bfloat16), wo2_ref[...],
                  preferred_element_type=jnp.float32) + bo2_ref[...]
    x_new = _layernorm(ffn + h1, ln2g_ref[...], ln2b_ref[...])
    x_sc[...] = x_new                                # carry to next layer

    # ---- last layer: fused MLM head -> lane-dense [M, V] logits ----
    @pl.when(layer == pl.num_programs(0) - 1)
    def _():
        t = jnp.dot(x_new.astype(jnp.bfloat16), hdw_ref[...],
                    preferred_element_type=jnp.float32) + hdb_ref[...]
        t = _gelu(t)
        t = _layernorm(t, hlng_ref[...], hlnb_ref[...])
        # Tied decoder: contract t's hidden axis directly against word_emb's
        # hidden axis (x @ W^T on the MXU) — no materialized transpose.
        logits = lax.dot_general(t.astype(jnp.bfloat16), dec_ref[...],
                                 dimension_numbers=(((1,), (1,)), ((), ())),
                                 preferred_element_type=jnp.float32)
        logits_ref[...] = logits + decb_ref[...]


def bert_pallas_forward(emb, mask_bh, params):
    """Embedding LN + all layers + MLM head in a single pallas_call."""
    M, H = emb.shape
    V = params["word_emb"].shape[0]

    def rep(arr):        # un-stacked arrays: same (only) block every layer
        return pl.BlockSpec(arr.shape, lambda l: (0,) * arr.ndim)

    def per_layer(arr):  # stacked [L, ...] params: one layer-slice per step
        return pl.BlockSpec((pl.Squeezed(),) + tuple(arr.shape[1:]),
                            lambda l: (l,) + (0,) * (arr.ndim - 1))

    rep_args = (emb, mask_bh, params["emb_ln_g"], params["emb_ln_b"])
    layer_args = (params["wqkv"], params["bqkv"], params["wo"], params["bo"],
                  params["ln1_g"], params["ln1_b"],
                  params["wi"], params["bi"], params["wo2"], params["bo2"],
                  params["ln2_g"], params["ln2_b"])
    head_args = (params["head_dense_w"], params["head_dense_b"],
                 params["head_ln_g"], params["head_ln_b"],
                 params["word_emb"], params["decoder_b"])

    in_specs = ([rep(a) for a in rep_args]
                + [per_layer(a) for a in layer_args]
                + [rep(a) for a in head_args])

    kernel = functools.partial(_bert_kernel, batch=mask_bh.shape[0] // N_HEADS,
                               seq=mask_bh.shape[1], n_heads=N_HEADS,
                               head_dim=HEAD_DIM)

    return pl.pallas_call(
        kernel,
        out_shape=jax.ShapeDtypeStruct((M, V), jnp.float32),
        grid=(N_LAYERS,),
        in_specs=in_specs,
        out_specs=pl.BlockSpec((M, V), lambda l: (0, 0)),   # written on last step
        scratch_shapes=[pltpu.VMEM((M, H), jnp.float32)],   # resident hidden carry
        compiler_params=pltpu.CompilerParams(
            dimension_semantics=("arbitrary",)),  # layer l+1 depends on layer l
    )(*rep_args, *layer_args, *head_args)


# ----------------------------- parameter init --------------------------------
def init_params(key):
    def normal(k, shape, dtype=jnp.float32):
        return (0.02 * jax.random.normal(k, shape, dtype=jnp.float32)).astype(dtype)

    keys = iter(jax.random.split(key, 32))
    H, I, L = HIDDEN, INTERMEDIATE, N_LAYERS
    p = {
        # MXU weights stored bf16 (halves weight HBM traffic); accum stays f32.
        "word_emb": normal(next(keys), (VOCAB, H), jnp.bfloat16),
        "pos_emb": normal(next(keys), (MAX_POS, H)),
        "type_emb": normal(next(keys), (TYPE_VOCAB, H)),
        "emb_ln_g": jnp.ones((1, H), jnp.float32),
        "emb_ln_b": jnp.zeros((1, H), jnp.float32),
        # Per-layer weights stacked on a leading [L] axis so the grid=(L,)
        # pipeline prefetches layer l+1 while layer l computes.
        "wqkv": normal(next(keys), (L, H, 3 * H), jnp.bfloat16),
        "bqkv": jnp.zeros((L, 1, 3 * H), jnp.float32),
        "wo": normal(next(keys), (L, H, H), jnp.bfloat16),
        "bo": jnp.zeros((L, 1, H), jnp.float32),
        "ln1_g": jnp.ones((L, 1, H), jnp.float32),
        "ln1_b": jnp.zeros((L, 1, H), jnp.float32),
        "wi": normal(next(keys), (L, H, I), jnp.bfloat16),
        "bi": jnp.zeros((L, 1, I), jnp.float32),
        "wo2": normal(next(keys), (L, I, H), jnp.bfloat16),
        "bo2": jnp.zeros((L, 1, H), jnp.float32),
        "ln2_g": jnp.ones((L, 1, H), jnp.float32),
        "ln2_b": jnp.zeros((L, 1, H), jnp.float32),
        # MLM head (BertOnlyMLMHead): dense + gelu + LayerNorm + tied decoder.
        "head_dense_w": normal(next(keys), (H, H), jnp.bfloat16),
        "head_dense_b": jnp.zeros((1, H), jnp.float32),
        "head_ln_g": jnp.ones((1, H), jnp.float32),
        "head_ln_b": jnp.zeros((1, H), jnp.float32),
        "decoder_b": jnp.zeros((1, VOCAB), jnp.float32),
    }
    return p


# ------------------------------ forward pass ---------------------------------
def bert_mlm_forward(params, input_ids, attention_mask=None, token_type_ids=None):
    B, S = input_ids.shape
    if attention_mask is None:
        attention_mask = jnp.ones((B, S), jnp.int32)
    if token_type_ids is None:
        token_type_ids = jnp.zeros((B, S), jnp.int32)

    # Embedding gathers are plain-JAX glue (single fused XLA op for the sum).
    emb = (params["word_emb"][input_ids].astype(jnp.float32)
           + params["pos_emb"][None, :S, :]
           + params["type_emb"][token_type_ids])
    x = emb.reshape(B * S, HIDDEN)

    # HF-style additive attention mask: 0 where attended, -1e9 elsewhere,
    # pre-tiled head-major to [nH*B, S] to match the kernel's head folding.
    mask_add = (1.0 - attention_mask.astype(jnp.float32)) * -1e9    # [B, S]
    mask_bh = jnp.tile(mask_add, (N_HEADS, 1))                      # [nH*B, S]

    logits = bert_pallas_forward(x, mask_bh, params)                # [B*S, V]
    return logits.reshape(B, S, VOCAB)


# --------------------------------- main ---------------------------------------
if __name__ == "__main__":
    key = jax.random.PRNGKey(0)
    pkey, ikey = jax.random.split(key)

    params = init_params(pkey)

    B, S = 2, 8
    input_ids = jax.random.randint(ikey, (B, S), 0, VOCAB, dtype=jnp.int32)
    attention_mask = jnp.ones((B, S), jnp.int32).at[1, -2:].set(0)  # pad last 2
    token_type_ids = jnp.zeros((B, S), jnp.int32)

    logits = bert_mlm_forward(params, input_ids, attention_mask, token_type_ids)
    logits = jax.block_until_ready(logits)

    assert logits.shape == (B, S, VOCAB), logits.shape
    assert logits.dtype == jnp.float32
    assert bool(jnp.all(jnp.isfinite(logits)))
    # NOTE: eraser branch of BertForMLM (erasers is not None) is not exercised;
    # forward here matches the erasers=None path returning MLM logits.
    # TODO(synk): loading LEACE erasers / HF pretrained weights from disk has
    # no in-script equivalent; weights are randomly initialized.
    print("KERNEL_OK")
</pallas_src>

<mosaic_0001>
module attributes {stable_mosaic.version = 11 : i64} {
  func.func @_bert_kernel(%arg0: i32, %arg1: memref<16x32xf32, #tpu.memory_space<vmem>>, %arg2: memref<4x8xf32, #tpu.memory_space<vmem>>, %arg3: memref<1x32xf32, #tpu.memory_space<vmem>>, %arg4: memref<1x32xf32, #tpu.memory_space<vmem>>, %arg5: memref<1x32x96xbf16, #tpu.memory_space<vmem>>, %arg6: memref<1x1x96xf32, #tpu.memory_space<vmem>>, %arg7: memref<1x32x32xbf16, #tpu.memory_space<vmem>>, %arg8: memref<1x1x32xf32, #tpu.memory_space<vmem>>, %arg9: memref<1x1x32xf32, #tpu.memory_space<vmem>>, %arg10: memref<1x1x32xf32, #tpu.memory_space<vmem>>, %arg11: memref<1x32x64xbf16, #tpu.memory_space<vmem>>, %arg12: memref<1x1x64xf32, #tpu.memory_space<vmem>>, %arg13: memref<1x64x32xbf16, #tpu.memory_space<vmem>>, %arg14: memref<1x1x32xf32, #tpu.memory_space<vmem>>, %arg15: memref<1x1x32xf32, #tpu.memory_space<vmem>>, %arg16: memref<1x1x32xf32, #tpu.memory_space<vmem>>, %arg17: memref<32x32xbf16, #tpu.memory_space<vmem>>, %arg18: memref<1x32xf32, #tpu.memory_space<vmem>>, %arg19: memref<1x32xf32, #tpu.memory_space<vmem>>, %arg20: memref<1x32xf32, #tpu.memory_space<vmem>>, %arg21: memref<128x32xbf16, #tpu.memory_space<vmem>>, %arg22: memref<1x128xf32, #tpu.memory_space<vmem>>, %arg23: memref<16x128xf32, #tpu.memory_space<vmem>>, %arg24: memref<16x32xf32, #tpu.memory_space<vmem>>) attributes {dimension_semantics = [#tpu.dimension_semantics<arbitrary>], iteration_bounds = array<i64: 2>, scalar_prefetch = 0 : i64, scratch_operands = 1 : i64, tpu.core_type = #tpu.core_type<tc>, window_params = [{pipeline_mode = #tpu.pipeline_mode<synchronous>, transform_indices = @transform_0, window_bounds = array<i64: 16, 32>}, {pipeline_mode = #tpu.pipeline_mode<synchronous>, transform_indices = @transform_1, window_bounds = array<i64: 4, 8>}, {pipeline_mode = #tpu.pipeline_mode<synchronous>, transform_indices = @transform_2, window_bounds = array<i64: 1, 32>}, {pipeline_mode = #tpu.pipeline_mode<synchronous>, transform_indices = @transform_3, window_bounds = array<i64: 1, 32>}, {transform_indices = @transform_4, window_bounds = array<i64: 1, 32, 96>}, {transform_indices = @transform_5, window_bounds = array<i64: 1, 1, 96>}, {transform_indices = @transform_6, window_bounds = array<i64: 1, 32, 32>}, {transform_indices = @transform_7, window_bounds = array<i64: 1, 1, 32>}, {transform_indices = @transform_8, window_bounds = array<i64: 1, 1, 32>}, {transform_indices = @transform_9, window_bounds = array<i64: 1, 1, 32>}, {transform_indices = @transform_10, window_bounds = array<i64: 1, 32, 64>}, {transform_indices = @transform_11, window_bounds = array<i64: 1, 1, 64>}, {transform_indices = @transform_12, window_bounds = array<i64: 1, 64, 32>}, {transform_indices = @transform_13, window_bounds = array<i64: 1, 1, 32>}, {transform_indices = @transform_14, window_bounds = array<i64: 1, 1, 32>}, {transform_indices = @transform_15, window_bounds = array<i64: 1, 1, 32>}, {pipeline_mode = #tpu.pipeline_mode<synchronous>, transform_indices = @transform_16, window_bounds = array<i64: 32, 32>}, {pipeline_mode = #tpu.pipeline_mode<synchronous>, transform_indices = @transform_17, window_bounds = array<i64: 1, 32>}, {pipeline_mode = #tpu.pipeline_mode<synchronous>, transform_indices = @transform_18, window_bounds = array<i64: 1, 32>}, {pipeline_mode = #tpu.pipeline_mode<synchronous>, transform_indices = @transform_19, window_bounds = array<i64: 1, 32>}, {pipeline_mode = #tpu.pipeline_mode<synchronous>, transform_indices = @transform_20, window_bounds = array<i64: 128, 32>}, {pipeline_mode = #tpu.pipeline_mode<synchronous>, transform_indices = @transform_21, window_bounds = array<i64: 1, 128>}, {pipeline_mode = #tpu.pipeline_mode<synchronous>, transform_indices = @transform_22, window_bounds = array<i64: 16, 128>}]} {
    %c0_i32 = arith.constant 0 : i32
    %0 = arith.cmpi eq, %arg0, %c0_i32 : i32
    %1 = arith.extui %0 : i1 to i32
    %c0_i32_0 = arith.constant 0 : i32
    %2 = arith.cmpi ne, %1, %c0_i32_0 : i32
    scf.if %2 {
      %c0_64 = arith.constant 0 : index
      %c0_65 = arith.constant 0 : index
      %147 = vector.load %arg1[%c0_64, %c0_65] : memref<16x32xf32, #tpu.memory_space<vmem>>, vector<16x32xf32>
      %c0_66 = arith.constant 0 : index
      %c0_67 = arith.constant 0 : index
      %148 = vector.load %arg3[%c0_66, %c0_67] : memref<1x32xf32, #tpu.memory_space<vmem>>, vector<1x32xf32>
      %c0_68 = arith.constant 0 : index
      %c0_69 = arith.constant 0 : index
      %149 = vector.load %arg4[%c0_68, %c0_69] : memref<1x32xf32, #tpu.memory_space<vmem>>, vector<1x32xf32>
      %cst_70 = arith.constant dense<0.000000e+00> : vector<16xf32>
      %150 = vector.multi_reduction <add>, %147, %cst_70 [1] : vector<16x32xf32> to vector<16xf32>
      %151 = vector.shape_cast %150 : vector<16xf32> to vector<16x1xf32>
      %cst_71 = arith.constant 3.200000e+01 : f32
      %152 = vector.broadcast %cst_71 : f32 to vector<16x1xf32>
      %153 = arith.divf %151, %152 : vector<16x1xf32>
      %154 = vector.broadcast %153 : vector<16x1xf32> to vector<16x32xf32>
      %155 = arith.subf %147, %154 : vector<16x32xf32>
      %156 = arith.mulf %155, %155 : vector<16x32xf32>
      %cst_72 = arith.constant dense<0.000000e+00> : vector<16xf32>
      %157 = vector.multi_reduction <add>, %156, %cst_72 [1] : vector<16x32xf32> to vector<16xf32>
      %158 = vector.shape_cast %157 : vector<16xf32> to vector<16x1xf32>
      %cst_73 = arith.constant 3.200000e+01 : f32
      %159 = vector.broadcast %cst_73 : f32 to vector<16x1xf32>
      %160 = arith.divf %158, %159 : vector<16x1xf32>
      %161 = vector.broadcast %153 : vector<16x1xf32> to vector<16x32xf32>
      %162 = arith.subf %147, %161 : vector<16x32xf32>
      %cst_74 = arith.constant 9.99999996E-13 : f32
      %163 = vector.broadcast %cst_74 : f32 to vector<16x1xf32>
      %164 = arith.addf %160, %163 : vector<16x1xf32>
      %165 = math.rsqrt %164 : vector<16x1xf32>
      %166 = vector.broadcast %165 : vector<16x1xf32> to vector<16x32xf32>
      %167 = arith.mulf %162, %166 : vector<16x32xf32>
      %168 = vector.broadcast %148 : vector<1x32xf32> to vector<16x32xf32>
      %169 = arith.mulf %167, %168 : vector<16x32xf32>
      %170 = vector.broadcast %149 : vector<1x32xf32> to vector<16x32xf32>
      %171 = arith.addf %169, %170 : vector<16x32xf32>
      %c0_75 = arith.constant 0 : index
      %c0_76 = arith.constant 0 : index
      %172 = vector.load %arg24[%c0_75, %c0_76] : memref<16x32xf32, #tpu.memory_space<vmem>>, vector<16x32xf32>
      tpu.vector_store %arg24[%c0_75, %c0_76], %171 {strides = array<i32>} : memref<16x32xf32, #tpu.memory_space<vmem>>, vector<16x32xf32>,
    } else {
    }
    %c0 = arith.constant 0 : index
    %c0_1 = arith.constant 0 : index
    %3 = vector.load %arg24[%c0, %c0_1] : memref<16x32xf32, #tpu.memory_space<vmem>>, vector<16x32xf32>
    %4 = arith.truncf %3 : vector<16x32xf32> to vector<16x32xbf16>
    %c0_2 = arith.constant 0 : index
    %c0_3 = arith.constant 0 : index
    %c0_4 = arith.constant 0 : index
    %5 = vector.load %arg5[%c0_2, %c0_3, %c0_4] : memref<1x32x96xbf16, #tpu.memory_space<vmem>>, vector<1x32x96xbf16>
    %6 = vector.shape_cast %5 : vector<1x32x96xbf16> to vector<32x96xbf16>
    %cst = arith.constant dense<0.000000e+00> : vector<16x96xf32>
    %7 = tpu.matmul %4, %6, %cst {dimension_numbers = #tpu.dot_dimension_numbers<[1], [0], [0], [1], [0, 0, 1, 1], [], []>} : vector<16x32xbf16>, vector<32x96xbf16>, vector<16x96xf32> -> vector<16x96xf32>
    %c0_5 = arith.constant 0 : index
    %c0_6 = arith.constant 0 : index
    %c0_7 = arith.constant 0 : index
    %8 = vector.load %arg6[%c0_5, %c0_6, %c0_7] : memref<1x1x96xf32, #tpu.memory_space<vmem>>, vector<1x1x96xf32>
    %9 = vector.shape_cast %8 : vector<1x1x96xf32> to vector<1x96xf32>
    %10 = vector.broadcast %9 : vector<1x96xf32> to vector<16x96xf32>
    %11 = arith.addf %7, %10 : vector<16x96xf32>
    %12 = vector.extract_strided_slice %11 {offsets = [0, 0], sizes = [16, 32], strides = [1, 1]} : vector<16x96xf32> to vector<16x32xf32>
    %cst_8 = arith.constant 2.500000e-01 : f32
    %13 = vector.broadcast %cst_8 : f32 to vector<16x32xf32>
    %14 = arith.mulf %12, %13 : vector<16x32xf32>
    %15 = vector.extract_strided_slice %11 {offsets = [0, 32], sizes = [16, 32], strides = [1, 1]} : vector<16x96xf32> to vector<16x32xf32>
    %16 = vector.extract_strided_slice %11 {offsets = [0, 64], sizes = [16, 32], strides = [1, 1]} : vector<16x96xf32> to vector<16x32xf32>
    %17 = vector.extract_strided_slice %14 {offsets = [0, 0], sizes = [16, 16], strides = [1, 1]} : vector<16x32xf32> to vector<16x16xf32>
    %18 = vector.shape_cast %17 : vector<16x16xf32> to vector<2x8x16xf32>
    %19 = vector.extract_strided_slice %14 {offsets = [0, 16], sizes = [16, 16], strides = [1, 1]} : vector<16x32xf32> to vector<16x16xf32>
    %20 = vector.shape_cast %19 : vector<16x16xf32> to vector<2x8x16xf32>
    %21 = tpu.concatenate %18, %20 in 0 : vector<2x8x16xf32>, vector<2x8x16xf32> -> vector<4x8x16xf32>
    %22 = arith.truncf %21 : vector<4x8x16xf32> to vector<4x8x16xbf16>
    %23 = vector.extract_strided_slice %15 {offsets = [0, 0], sizes = [16, 16], strides = [1, 1]} : vector<16x32xf32> to vector<16x16xf32>
    %24 = vector.shape_cast %23 : vector<16x16xf32> to vector<2x8x16xf32>
    %25 = vector.extract_strided_slice %15 {offsets = [0, 16], sizes = [16, 16], strides = [1, 1]} : vector<16x32xf32> to vector<16x16xf32>
    %26 = vector.shape_cast %25 : vector<16x16xf32> to vector<2x8x16xf32>
    %27 = tpu.concatenate %24, %26 in 0 : vector<2x8x16xf32>, vector<2x8x16xf32> -> vector<4x8x16xf32>
    %28 = arith.truncf %27 : vector<4x8x16xf32> to vector<4x8x16xbf16>
    %29 = vector.extract_strided_slice %16 {offsets = [0, 0], sizes = [16, 16], strides = [1, 1]} : vector<16x32xf32> to vector<16x16xf32>
    %30 = vector.shape_cast %29 : vector<16x16xf32> to vector<2x8x16xf32>
    %31 = vector.extract_strided_slice %16 {offsets = [0, 16], sizes = [16, 16], strides = [1, 1]} : vector<16x32xf32> to vector<16x16xf32>
    %32 = vector.shape_cast %31 : vector<16x16xf32> to vector<2x8x16xf32>
    %33 = tpu.concatenate %30, %32 in 0 : vector<2x8x16xf32>, vector<2x8x16xf32> -> vector<4x8x16xf32>
    %34 = arith.truncf %33 : vector<4x8x16xf32> to vector<4x8x16xbf16>
    "tpu.trace_start"() <{level = 10 : i32, message = "bqd,bkd->bqk"}> : () -> ()
    %cst_9 = arith.constant dense<0.000000e+00> : vector<4x8x8xf32>
    %35 = tpu.matmul %22, %28, %cst_9 {dimension_numbers = #tpu.dot_dimension_numbers<[2], [2], [1], [1], [0, 0, 0, 1, 1, 1], [0], [0]>} : vector<4x8x16xbf16>, vector<4x8x16xbf16>, vector<4x8x8xf32> -> vector<4x8x8xf32>
    "tpu.trace_stop"() : () -> ()
    %c0_10 = arith.constant 0 : index
    %c0_11 = arith.constant 0 : index
    %36 = vector.load %arg2[%c0_10, %c0_11] : memref<4x8xf32, #tpu.memory_space<vmem>>, vector<4x8xf32>
    %37 = vector.shape_cast %36 : vector<4x8xf32> to vector<4x1x8xf32>
    %38 = vector.broadcast %37 : vector<4x1x8xf32> to vector<4x8x8xf32>
    %39 = arith.addf %35, %38 : vector<4x8x8xf32>
    %cst_12 = arith.constant dense<0xFF800000> : vector<4x8xf32>
    %40 = vector.multi_reduction <maximumf>, %39, %cst_12 [2] : vector<4x8x8xf32> to vector<4x8xf32>
    %41 = vector.shape_cast %40 : vector<4x8xf32> to vector<4x8x1xf32>
    %42 = vector.broadcast %41 : vector<4x8x1xf32> to vector<4x8x8xf32>
    %43 = arith.subf %39, %42 : vector<4x8x8xf32>
    %44 = math.exp %43 : vector<4x8x8xf32>
    %cst_13 = arith.constant dense<0.000000e+00> : vector<4x8xf32>
    %45 = vector.multi_reduction <add>, %44, %cst_13 [2] : vector<4x8x8xf32> to vector<4x8xf32>
    %46 = vector.shape_cast %45 : vector<4x8xf32> to vector<4x8x1xf32>
    %47 = tpu.reciprocal %46 {approx = true} : vector<4x8x1xf32> -> vector<4x8x1xf32>
    %48 = vector.broadcast %47 : vector<4x8x1xf32> to vector<4x8x8xf32>
    %49 = arith.mulf %44, %48 : vector<4x8x8xf32>
    %50 = arith.truncf %49 : vector<4x8x8xf32> to vector<4x8x8xbf16>
    "tpu.trace_start"() <{level = 10 : i32, message = "bqk,bkd->bqd"}> : () -> ()
    %cst_14 = arith.constant dense<0.000000e+00> : vector<4x8x16xf32>
    %51 = tpu.matmul %50, %34, %cst_14 {dimension_numbers = #tpu.dot_dimension_numbers<[2], [1], [1], [2], [0, 0, 0, 1, 1, 2], [0], [0]>} : vector<4x8x8xbf16>, vector<4x8x16xbf16>, vector<4x8x16xf32> -> vector<4x8x16xf32>
    "tpu.trace_stop"() : () -> ()
    %52 = vector.extract_strided_slice %51 {offsets = [0, 0, 0], sizes = [2, 8, 16], strides = [1, 1, 1]} : vector<4x8x16xf32> to vector<2x8x16xf32>
    %53 = vector.shape_cast %52 : vector<2x8x16xf32> to vector<16x16xf32>
    %54 = vector.extract_strided_slice %51 {offsets = [2, 0, 0], sizes = [2, 8, 16], strides = [1, 1, 1]} : vector<4x8x16xf32> to vector<2x8x16xf32>
    %55 = vector.shape_cast %54 : vector<2x8x16xf32> to vector<16x16xf32>
    %56 = tpu.concatenate %53, %55 in 1 : vector<16x16xf32>, vector<16x16xf32> -> vector<16x32xf32>
    %57 = arith.truncf %56 : vector<16x32xf32> to vector<16x32xbf16>
    %c0_15 = arith.constant 0 : index
    %c0_16 = arith.constant 0 : index
    %c0_17 = arith.constant 0 : index
    %58 = vector.load %arg7[%c0_15, %c0_16, %c0_17] : memref<1x32x32xbf16, #tpu.memory_space<vmem>>, vector<1x32x32xbf16>
    %59 = vector.shape_cast %58 : vector<1x32x32xbf16> to vector<32x32xbf16>
    %cst_18 = arith.constant dense<0.000000e+00> : vector<16x32xf32>
    %60 = tpu.matmul %57, %59, %cst_18 {dimension_numbers = #tpu.dot_dimension_numbers<[1], [0], [0], [1], [0, 0, 1, 1], [], []>} : vector<16x32xbf16>, vector<32x32xbf16>, vector<16x32xf32> -> vector<16x32xf32>
    %c0_19 = arith.constant 0 : index
    %c0_20 = arith.constant 0 : index
    %c0_21 = arith.constant 0 : index
    %61 = vector.load %arg8[%c0_19, %c0_20, %c0_21] : memref<1x1x32xf32, #tpu.memory_space<vmem>>, vector<1x1x32xf32>
    %62 = vector.shape_cast %61 : vector<1x1x32xf32> to vector<1x32xf32>
    %63 = vector.broadcast %62 : vector<1x32xf32> to vector<16x32xf32>
    %64 = arith.addf %60, %63 : vector<16x32xf32>
    %65 = arith.addf %64, %3 : vector<16x32xf32>
    %c0_22 = arith.constant 0 : index
    %c0_23 = arith.constant 0 : index
    %c0_24 = arith.constant 0 : index
    %66 = vector.load %arg9[%c0_22, %c0_23, %c0_24] : memref<1x1x32xf32, #tpu.memory_space<vmem>>, vector<1x1x32xf32>
    %67 = vector.shape_cast %66 : vector<1x1x32xf32> to vector<1x32xf32>
    %c0_25 = arith.constant 0 : index
    %c0_26 = arith.constant 0 : index
    %c0_27 = arith.constant 0 : index
    %68 = vector.load %arg10[%c0_25, %c0_26, %c0_27] : memref<1x1x32xf32, #tpu.memory_space<vmem>>, vector<1x1x32xf32>
    %69 = vector.shape_cast %68 : vector<1x1x32xf32> to vector<1x32xf32>
    %cst_28 = arith.constant dense<0.000000e+00> : vector<16xf32>
    %70 = vector.multi_reduction <add>, %65, %cst_28 [1] : vector<16x32xf32> to vector<16xf32>
    %71 = vector.shape_cast %70 : vector<16xf32> to vector<16x1xf32>
    %cst_29 = arith.constant 3.200000e+01 : f32
    %72 = vector.broadcast %cst_29 : f32 to vector<16x1xf32>
    %73 = arith.divf %71, %72 : vector<16x1xf32>
    %74 = vector.broadcast %73 : vector<16x1xf32> to vector<16x32xf32>
    %75 = arith.subf %65, %74 : vector<16x32xf32>
    %76 = arith.mulf %75, %75 : vector<16x32xf32>
    %cst_30 = arith.constant dense<0.000000e+00> : vector<16xf32>
    %77 = vector.multi_reduction <add>, %76, %cst_30 [1] : vector<16x32xf32> to vector<16xf32>
    %78 = vector.shape_cast %77 : vector<16xf32> to vector<16x1xf32>
    %cst_31 = arith.constant 3.200000e+01 : f32
    %79 = vector.broadcast %cst_31 : f32 to vector<16x1xf32>
    %80 = arith.divf %78, %79 : vector<16x1xf32>
    %81 = vector.broadcast %73 : vector<16x1xf32> to vector<16x32xf32>
    %82 = arith.subf %65, %81 : vector<16x32xf32>
    %cst_32 = arith.constant 9.99999996E-13 : f32
    %83 = vector.broadcast %cst_32 : f32 to vector<16x1xf32>
    %84 = arith.addf %80, %83 : vector<16x1xf32>
    %85 = math.rsqrt %84 : vector<16x1xf32>
    %86 = vector.broadcast %85 : vector<16x1xf32> to vector<16x32xf32>
    %87 = arith.mulf %82, %86 : vector<16x32xf32>
    %88 = vector.broadcast %67 : vector<1x32xf32> to vector<16x32xf32>
    %89 = arith.mulf %87, %88 : vector<16x32xf32>
    %90 = vector.broadcast %69 : vector<1x32xf32> to vector<16x32xf32>
    %91 = arith.addf %89, %90 : vector<16x32xf32>
    %92 = arith.truncf %91 : vector<16x32xf32> to vector<16x32xbf16>
    %c0_33 = arith.constant 0 : index
    %c0_34 = arith.constant 0 : index
    %c0_35 = arith.constant 0 : index
    %93 = vector.load %arg11[%c0_33, %c0_34, %c0_35] : memref<1x32x64xbf16, #tpu.memory_space<vmem>>, vector<1x32x64xbf16>
    %94 = vector.shape_cast %93 : vector<1x32x64xbf16> to vector<32x64xbf16>
    %cst_36 = arith.constant dense<0.000000e+00> : vector<16x64xf32>
    %95 = tpu.matmul %92, %94, %cst_36 {dimension_numbers = #tpu.dot_dimension_numbers<[1], [0], [0], [1], [0, 0, 1, 1], [], []>} : vector<16x32xbf16>, vector<32x64xbf16>, vector<16x64xf32> -> vector<16x64xf32>
    %c0_37 = arith.constant 0 : index
    %c0_38 = arith.constant 0 : index
    %c0_39 = arith.constant 0 : index
    %96 = vector.load %arg12[%c0_37, %c0_38, %c0_39] : memref<1x1x64xf32, #tpu.memory_space<vmem>>, vector<1x1x64xf32>
    %97 = vector.shape_cast %96 : vector<1x1x64xf32> to vector<1x64xf32>
    %98 = vector.broadcast %97 : vector<1x64xf32> to vector<16x64xf32>
    %99 = arith.addf %95, %98 : vector<16x64xf32>
    %cst_40 = arith.constant 5.000000e-01 : f32
    %100 = vector.broadcast %cst_40 : f32 to vector<16x64xf32>
    %101 = arith.mulf %100, %99 : vector<16x64xf32>
    %cst_41 = arith.constant 1.41421354 : f32
    %102 = vector.broadcast %cst_41 : f32 to vector<16x64xf32>
    %103 = arith.divf %99, %102 : vector<16x64xf32>
    %104 = math.erf %103 : vector<16x64xf32>
    %cst_42 = arith.constant 1.000000e+00 : f32
    %105 = vector.broadcast %cst_42 : f32 to vector<16x64xf32>
    %106 = arith.addf %105, %104 : vector<16x64xf32>
    %107 = arith.mulf %101, %106 : vector<16x64xf32>
    %108 = arith.truncf %107 : vector<16x64xf32> to vector<16x64xbf16>
    %c0_43 = arith.constant 0 : index
    %c0_44 = arith.constant 0 : index
    %c0_45 = arith.constant 0 : index
    %109 = vector.load %arg13[%c0_43, %c0_44, %c0_45] : memref<1x64x32xbf16, #tpu.memory_space<vmem>>, vector<1x64x32xbf16>
    %110 = vector.shape_cast %109 : vector<1x64x32xbf16> to vector<64x32xbf16>
    %cst_46 = arith.constant dense<0.000000e+00> : vector<16x32xf32>
    %111 = tpu.matmul %108, %110, %cst_46 {dimension_numbers = #tpu.dot_dimension_numbers<[1], [0], [0], [1], [0, 0, 1, 1], [], []>} : vector<16x64xbf16>, vector<64x32xbf16>, vector<16x32xf32> -> vector<16x32xf32>
    %c0_47 = arith.constant 0 : index
    %c0_48 = arith.constant 0 : index
    %c0_49 = arith.constant 0 : index
    %112 = vector.load %arg14[%c0_47, %c0_48, %c0_49] : memref<1x1x32xf32, #tpu.memory_space<vmem>>, vector<1x1x32xf32>
    %113 = vector.shape_cast %112 : vector<1x1x32xf32> to vector<1x32xf32>
    %114 = vector.broadcast %113 : vector<1x32xf32> to vector<16x32xf32>
    %115 = arith.addf %111, %114 : vector<16x32xf32>
    %116 = arith.addf %115, %91 : vector<16x32xf32>
    %c0_50 = arith.constant 0 : index
    %c0_51 = arith.constant 0 : index
    %c0_52 = arith.constant 0 : index
    %117 = vector.load %arg15[%c0_50, %c0_51, %c0_52] : memref<1x1x32xf32, #tpu.memory_space<vmem>>, vector<1x1x32xf32>
    %118 = vector.shape_cast %117 : vector<1x1x32xf32> to vector<1x32xf32>
    %c0_53 = arith.constant 0 : index
    %c0_54 = arith.constant 0 : index
    %c0_55 = arith.constant 0 : index
    %119 = vector.load %arg16[%c0_53, %c0_54, %c0_55] : memref<1x1x32xf32, #tpu.memory_space<vmem>>, vector<1x1x32xf32>
    %120 = vector.shape_cast %119 : vector<1x1x32xf32> to vector<1x32xf32>
    %cst_56 = arith.constant dense<0.000000e+00> : vector<16xf32>
    %121 = vector.multi_reduction <add>, %116, %cst_56 [1] : vector<16x32xf32> to vector<16xf32>
    %122 = vector.shape_cast %121 : vector<16xf32> to vector<16x1xf32>
    %cst_57 = arith.constant 3.200000e+01 : f32
    %123 = vector.broadcast %cst_57 : f32 to vector<16x1xf32>
    %124 = arith.divf %122, %123 : vector<16x1xf32>
    %125 = vector.broadcast %124 : vector<16x1xf32> to vector<16x32xf32>
    %126 = arith.subf %116, %125 : vector<16x32xf32>
    %127 = arith.mulf %126, %126 : vector<16x32xf32>
    %cst_58 = arith.constant dense<0.000000e+00> : vector<16xf32>
    %128 = vector.multi_reduction <add>, %127, %cst_58 [1] : vector<16x32xf32> to vector<16xf32>
    %129 = vector.shape_cast %128 : vector<16xf32> to vector<16x1xf32>
    %cst_59 = arith.constant 3.200000e+01 : f32
    %130 = vector.broadcast %cst_59 : f32 to vector<16x1xf32>
    %131 = arith.divf %129, %130 : vector<16x1xf32>
    %132 = vector.broadcast %124 : vector<16x1xf32> to vector<16x32xf32>
    %133 = arith.subf %116, %132 : vector<16x32xf32>
    %cst_60 = arith.constant 9.99999996E-13 : f32
    %134 = vector.broadcast %cst_60 : f32 to vector<16x1xf32>
    %135 = arith.addf %131, %134 : vector<16x1xf32>
    %136 = math.rsqrt %135 : vector<16x1xf32>
    %137 = vector.broadcast %136 : vector<16x1xf32> to vector<16x32xf32>
    %138 = arith.mulf %133, %137 : vector<16x32xf32>
    %139 = vector.broadcast %118 : vector<1x32xf32> to vector<16x32xf32>
    %140 = arith.mulf %138, %139 : vector<16x32xf32>
    %141 = vector.broadcast %120 : vector<1x32xf32> to vector<16x32xf32>
    %142 = arith.addf %140, %141 : vector<16x32xf32>
    %c0_61 = arith.constant 0 : index
    %c0_62 = arith.constant 0 : index
    %143 = vector.load %arg24[%c0_61, %c0_62] : memref<16x32xf32, #tpu.memory_space<vmem>>, vector<16x32xf32>
    tpu.vector_store %arg24[%c0_61, %c0_62], %142 {strides = array<i32>} : memref<16x32xf32, #tpu.memory_space<vmem>>, vector<16x32xf32>,
    %c1_i32 = arith.constant 1 : i32
    %144 = arith.cmpi eq, %arg0, %c1_i32 : i32
    %145 = arith.extui %144 : i1 to i32
    %c0_i32_63 = arith.constant 0 : i32
    %146 = arith.cmpi ne, %145, %c0_i32_63 : i32
    scf.if %146 {
      %147 = arith.truncf %142 : vector<16x32xf32> to vector<16x32xbf16>
      %c0_64 = arith.constant 0 : index
      %c0_65 = arith.constant 0 : index
      %148 = vector.load %arg17[%c0_64, %c0_65] : memref<32x32xbf16, #tpu.memory_space<vmem>>, vector<32x32xbf16>
      %cst_66 = arith.constant dense<0.000000e+00> : vector<16x32xf32>
      %149 = tpu.matmul %147, %148, %cst_66 {dimension_numbers = #tpu.dot_dimension_numbers<[1], [0], [0], [1], [0, 0, 1, 1], [], []>} : vector<16x32xbf16>, vector<32x32xbf16>, vector<16x32xf32> -> vector<16x32xf32>
      %c0_67 = arith.constant 0 : index
      %c0_68 = arith.constant 0 : index
      %150 = vector.load %arg18[%c0_67, %c0_68] : memref<1x32xf32, #tpu.memory_space<vmem>>, vector<1x32xf32>
      %151 = vector.broadcast %150 : vector<1x32xf32> to vector<16x32xf32>
      %152 = arith.addf %149, %151 : vector<16x32xf32>
      %cst_69 = arith.constant 5.000000e-01 : f32
      %153 = vector.broadcast %cst_69 : f32 to vector<16x32xf32>
      %154 = arith.mulf %153, %152 : vector<16x32xf32>
      %cst_70 = arith.constant 1.41421354 : f32
      %155 = vector.broadcast %cst_70 : f32 to vector<16x32xf32>
      %156 = arith.divf %152, %155 : vector<16x32xf32>
      %157 = math.erf %156 : vector<16x32xf32>
      %cst_71 = arith.constant 1.000000e+00 : f32
      %158 = vector.broadcast %cst_71 : f32 to vector<16x32xf32>
      %159 = arith.addf %158, %157 : vector<16x32xf32>
      %160 = arith.mulf %154, %159 : vector<16x32xf32>
      %c0_72 = arith.constant 0 : index
      %c0_73 = arith.constant 0 : index
      %161 = vector.load %arg19[%c0_72, %c0_73] : memref<1x32xf32, #tpu.memory_space<vmem>>, vector<1x32xf32>
      %c0_74 = arith.constant 0 : index
      %c0_75 = arith.constant 0 : index
      %162 = vector.load %arg20[%c0_74, %c0_75] : memref<1x32xf32, #tpu.memory_space<vmem>>, vector<1x32xf32>
      %cst_76 = arith.constant dense<0.000000e+00> : vector<16xf32>
      %163 = vector.multi_reduction <add>, %160, %cst_76 [1] : vector<16x32xf32> to vector<16xf32>
      %164 = vector.shape_cast %163 : vector<16xf32> to vector<16x1xf32>
      %cst_77 = arith.constant 3.200000e+01 : f32
      %165 = vector.broadcast %cst_77 : f32 to vector<16x1xf32>
      %166 = arith.divf %164, %165 : vector<16x1xf32>
      %167 = vector.broadcast %166 : vector<16x1xf32> to vector<16x32xf32>
      %168 = arith.subf %160, %167 : vector<16x32xf32>
      %169 = arith.mulf %168, %168 : vector<16x32xf32>
      %cst_78 = arith.constant dense<0.000000e+00> : vector<16xf32>
      %170 = vector.multi_reduction <add>, %169, %cst_78 [1] : vector<16x32xf32> to vector<16xf32>
      %171 = vector.shape_cast %170 : vector<16xf32> to vector<16x1xf32>
      %cst_79 = arith.constant 3.200000e+01 : f32
      %172 = vector.broadcast %cst_79 : f32 to vector<16x1xf32>
      %173 = arith.divf %171, %172 : vector<16x1xf32>
      %174 = vector.broadcast %166 : vector<16x1xf32> to vector<16x32xf32>
      %175 = arith.subf %160, %174 : vector<16x32xf32>
      %cst_80 = arith.constant 9.99999996E-13 : f32
      %176 = vector.broadcast %cst_80 : f32 to vector<16x1xf32>
      %177 = arith.addf %173, %176 : vector<16x1xf32>
      %178 = math.rsqrt %177 : vector<16x1xf32>
      %179 = vector.broadcast %178 : vector<16x1xf32> to vector<16x32xf32>
      %180 = arith.mulf %175, %179 : vector<16x32xf32>
      %181 = vector.broadcast %161 : vector<1x32xf32> to vector<16x32xf32>
      %182 = arith.mulf %180, %181 : vector<16x32xf32>
      %183 = vector.broadcast %162 : vector<1x32xf32> to vector<16x32xf32>
      %184 = arith.addf %182, %183 : vector<16x32xf32>
      %185 = arith.truncf %184 : vector<16x32xf32> to vector<16x32xbf16>
      %c0_81 = arith.constant 0 : index
      %c0_82 = arith.constant 0 : index
      %186 = vector.load %arg21[%c0_81, %c0_82] : memref<128x32xbf16, #tpu.memory_space<vmem>>, vector<128x32xbf16>
      %cst_83 = arith.constant dense<0.000000e+00> : vector<16x128xf32>
      %187 = tpu.matmul %185, %186, %cst_83 {dimension_numbers = #tpu.dot_dimension_numbers<[1], [1], [0], [0], [0, 0, 1, 0], [], []>} : vector<16x32xbf16>, vector<128x32xbf16>, vector<16x128xf32> -> vector<16x128xf32>
      %c0_84 = arith.constant 0 : index
      %c0_85 = arith.constant 0 : index
      %188 = vector.load %arg22[%c0_84, %c0_85] : memref<1x128xf32, #tpu.memory_space<vmem>>, vector<1x128xf32>
      %189 = vector.broadcast %188 : vector<1x128xf32> to vector<16x128xf32>
      %190 = arith.addf %187, %189 : vector<16x128xf32>
      %c0_86 = arith.constant 0 : index
      %c0_87 = arith.constant 0 : index
      %191 = vector.load %arg23[%c0_86, %c0_87] : memref<16x128xf32, #tpu.memory_space<vmem>>, vector<16x128xf32>
      tpu.vector_store %arg23[%c0_86, %c0_87], %190 {strides = array<i32>} : memref<16x128xf32, #tpu.memory_space<vmem>>, vector<16x128xf32>,
    } else {
    }
    return
  }
  func.func @transform_0(%arg0: i32) -> (i32, i32) {
    %c0_i32 = arith.constant 0 : i32
    %c0_i32_0 = arith.constant 0 : i32
    %c0_i32_1 = arith.constant 0 : i32
    return %c0_i32, %c0_i32_0 : i32, i32
  }
  func.func @transform_1(%arg0: i32) -> (i32, i32) {
    %c0_i32 = arith.constant 0 : i32
    %c0_i32_0 = arith.constant 0 : i32
    %c0_i32_1 = arith.constant 0 : i32
    return %c0_i32, %c0_i32_0 : i32, i32
  }
  func.func @transform_2(%arg0: i32) -> (i32, i32) {
    %c0_i32 = arith.constant 0 : i32
    %c0_i32_0 = arith.constant 0 : i32
    %c0_i32_1 = arith.constant 0 : i32
    return %c0_i32, %c0_i32_0 : i32, i32
  }
  func.func @transform_3(%arg0: i32) -> (i32, i32) {
    %c0_i32 = arith.constant 0 : i32
    %c0_i32_0 = arith.constant 0 : i32
    %c0_i32_1 = arith.constant 0 : i32
    return %c0_i32, %c0_i32_0 : i32, i32
  }
  func.func @transform_4(%arg0: i32) -> (i32, i32, i32) {
    %c0_i32 = arith.constant 0 : i32
    %c0_i32_0 = arith.constant 0 : i32
    %c0_i32_1 = arith.constant 0 : i32
    return %arg0, %c0_i32, %c0_i32_0 : i32, i32, i32
  }
  func.func @transform_5(%arg0: i32) -> (i32, i32, i32) {
    %c0_i32 = arith.constant 0 : i32
    %c0_i32_0 = arith.constant 0 : i32
    %c0_i32_1 = arith.constant 0 : i32
    return %arg0, %c0_i32, %c0_i32_0 : i32, i32, i32
  }
  func.func @transform_6(%arg0: i32) -> (i32, i32, i32) {
    %c0_i32 = arith.constant 0 : i32
    %c0_i32_0 = arith.constant 0 : i32
    %c0_i32_1 = arith.constant 0 : i32
    return %arg0, %c0_i32, %c0_i32_0 : i32, i32, i32
  }
  func.func @transform_7(%arg0: i32) -> (i32, i32, i32) {
    %c0_i32 = arith.constant 0 : i32
    %c0_i32_0 = arith.constant 0 : i32
    %c0_i32_1 = arith.constant 0 : i32
    return %arg0, %c0_i32, %c0_i32_0 : i32, i32, i32
  }
  func.func @transform_8(%arg0: i32) -> (i32, i32, i32) {
    %c0_i32 = arith.constant 0 : i32
    %c0_i32_0 = arith.constant 0 : i32
    %c0_i32_1 = arith.constant 0 : i32
    return %arg0, %c0_i32, %c0_i32_0 : i32, i32, i32
  }
  func.func @transform_9(%arg0: i32) -> (i32, i32, i32) {
    %c0_i32 = arith.constant 0 : i32
    %c0_i32_0 = arith.constant 0 : i32
    %c0_i32_1 = arith.constant 0 : i32
    return %arg0, %c0_i32, %c0_i32_0 : i32, i32, i32
  }
  func.func @transform_10(%arg0: i32) -> (i32, i32, i32) {
    %c0_i32 = arith.constant 0 : i32
    %c0_i32_0 = arith.constant 0 : i32
    %c0_i32_1 = arith.constant 0 : i32
    return %arg0, %c0_i32, %c0_i32_0 : i32, i32, i32
  }
  func.func @transform_11(%arg0: i32) -> (i32, i32, i32) {
    %c0_i32 = arith.constant 0 : i32
    %c0_i32_0 = arith.constant 0 : i32
    %c0_i32_1 = arith.constant 0 : i32
    return %arg0, %c0_i32, %c0_i32_0 : i32, i32, i32
  }
  func.func @transform_12(%arg0: i32) -> (i32, i32, i32) {
    %c0_i32 = arith.constant 0 : i32
    %c0_i32_0 = arith.constant 0 : i32
    %c0_i32_1 = arith.constant 0 : i32
    return %arg0, %c0_i32, %c0_i32_0 : i32, i32, i32
  }
  func.func @transform_13(%arg0: i32) -> (i32, i32, i32) {
    %c0_i32 = arith.constant 0 : i32
    %c0_i32_0 = arith.constant 0 : i32
    %c0_i32_1 = arith.constant 0 : i32
    return %arg0, %c0_i32, %c0_i32_0 : i32, i32, i32
  }
  func.func @transform_14(%arg0: i32) -> (i32, i32, i32) {
    %c0_i32 = arith.constant 0 : i32
    %c0_i32_0 = arith.constant 0 : i32
    %c0_i32_1 = arith.constant 0 : i32
    return %arg0, %c0_i32, %c0_i32_0 : i32, i32, i32
  }
  func.func @transform_15(%arg0: i32) -> (i32, i32, i32) {
    %c0_i32 = arith.constant 0 : i32
    %c0_i32_0 = arith.constant 0 : i32
    %c0_i32_1 = arith.constant 0 : i32
    return %arg0, %c0_i32, %c0_i32_0 : i32, i32, i32
  }
  func.func @transform_16(%arg0: i32) -> (i32, i32) {
    %c0_i32 = arith.constant 0 : i32
    %c0_i32_0 = arith.constant 0 : i32
    %c0_i32_1 = arith.constant 0 : i32
    return %c0_i32, %c0_i32_0 : i32, i32
  }
  func.func @transform_17(%arg0: i32) -> (i32, i32) {
    %c0_i32 = arith.constant 0 : i32
    %c0_i32_0 = arith.constant 0 : i32
    %c0_i32_1 = arith.constant 0 : i32
    return %c0_i32, %c0_i32_0 : i32, i32
  }
  func.func @transform_18(%arg0: i32) -> (i32, i32) {
    %c0_i32 = arith.constant 0 : i32
    %c0_i32_0 = arith.constant 0 : i32
    %c0_i32_1 = arith.constant 0 : i32
    return %c0_i32, %c0_i32_0 : i32, i32
  }
  func.func @transform_19(%arg0: i32) -> (i32, i32) {
    %c0_i32 = arith.constant 0 : i32
    %c0_i32_0 = arith.constant 0 : i32
    %c0_i32_1 = arith.constant 0 : i32
    return %c0_i32, %c0_i32_0 : i32, i32
  }
  func.func @transform_20(%arg0: i32) -> (i32, i32) {
    %c0_i32 = arith.constant 0 : i32
    %c0_i32_0 = arith.constant 0 : i32
    %c0_i32_1 = arith.constant 0 : i32
    return %c0_i32, %c0_i32_0 : i32, i32
  }
  func.func @transform_21(%arg0: i32) -> (i32, i32) {
    %c0_i32 = arith.constant 0 : i32
    %c0_i32_0 = arith.constant 0 : i32
    %c0_i32_1 = arith.constant 0 : i32
    return %c0_i32, %c0_i32_0 : i32, i32
  }
  func.func @transform_22(%arg0: i32) -> (i32, i32) {
    %c0_i32 = arith.constant 0 : i32
    %c0_i32_0 = arith.constant 0 : i32
    %c0_i32_1 = arith.constant 0 : i32
    return %c0_i32, %c0_i32_0 : i32, i32
  }
}

</mosaic_0001>

<llo_original>
// kernel: tpu_custom_call.1
$region0: #{tpu_custom_call.1}
  #allocation0 [shape = 'u32[]', space=smem, size = 0x4, offset = 0x4, fixed_abs, tag = 'smem constant byte address 0x4 - core index']
  #allocation1 [shape = 'u32[144,128]{1,0:T(1,128)}', space=vmem, size = 0x12000, scoped, tag = 'internal scratch']
  #allocation2 [shape = 'f32[16,32]{1,0:T(8,128)}', space=vmem, size = 0x2000, scoped, tag = 'scratch operand']
  %s0 = inlined_call_operand.vmem [shape: f32[16,32], index: 0, kind: input, shape index: {}]
  %s1 = inlined_call_operand.vmem [shape: f32[4,8], index: 1, kind: input, shape index: {}]
  %s2 = inlined_call_operand.vmem [shape: f32[1,32], index: 2, kind: input, shape index: {}]
  %s3 = inlined_call_operand.vmem [shape: f32[1,32], index: 3, kind: input, shape index: {}]
  %s4 = inlined_call_operand.vmem [shape: bf16[2,32,96], index: 4, kind: input, shape index: {}]
  %s5 = inlined_call_operand.vmem [shape: f32[2,1,96], index: 5, kind: input, shape index: {}]
  %s6 = inlined_call_operand.vmem [shape: bf16[2,32,32], index: 6, kind: input, shape index: {}]
  %s7 = inlined_call_operand.vmem [shape: f32[2,1,32], index: 7, kind: input, shape index: {}]
  %s8 = inlined_call_operand.vmem [shape: f32[2,1,32], index: 8, kind: input, shape index: {}]
  %s9 = inlined_call_operand.vmem [shape: f32[2,1,32], index: 9, kind: input, shape index: {}]
  %s10 = inlined_call_operand.vmem [shape: bf16[2,32,64], index: 10, kind: input, shape index: {}]
  %s11 = inlined_call_operand.vmem [shape: f32[2,1,64], index: 11, kind: input, shape index: {}]
  %s12 = inlined_call_operand.vmem [shape: bf16[2,64,32], index: 12, kind: input, shape index: {}]
  %s13 = inlined_call_operand.vmem [shape: f32[2,1,32], index: 13, kind: input, shape index: {}]
  %s14 = inlined_call_operand.vmem [shape: f32[2,1,32], index: 14, kind: input, shape index: {}]
  %s15 = inlined_call_operand.vmem [shape: f32[2,1,32], index: 15, kind: input, shape index: {}]
  %s16 = inlined_call_operand.vmem [shape: bf16[32,32], index: 16, kind: input, shape index: {}]
  %s17 = inlined_call_operand.vmem [shape: f32[1,32], index: 17, kind: input, shape index: {}]
  %s18 = inlined_call_operand.vmem [shape: f32[1,32], index: 18, kind: input, shape index: {}]
  %s19 = inlined_call_operand.vmem [shape: f32[1,32], index: 19, kind: input, shape index: {}]
  %s20 = inlined_call_operand.vmem [shape: bf16[128,32], index: 20, kind: input, shape index: {}]
  %s21 = inlined_call_operand.vmem [shape: f32[1,128], index: 21, kind: input, shape index: {}]
  %s22 = inlined_call_operand.hbm [shape: f32[16,128], index: 22, kind: output, shape index: {}]
  %s23 = sld [smem:[#allocation0]]
  $region129: #{tpu_custom_call.1} parent=0
    _
  %s25 = ssub.s32 1, %s23
  %s26 = scalar_select 0, %s25, %s23
  $region1: #{tpu_custom_call.1} parent=0
    #allocation3 [shape = 'u8[8192]{0}', space=vmem, size = 0x2000, scoped, tag = 'output window, operand 0, single buffered']
    #allocation4 [shape = 's32[2]{0}', space=sflag, size = 0x8, scoped, tag = 'scoped memory for tpu_custom_call.1']
    %27 = vsyncpa [#allocation4], 0
    loop: start=0, step=1, limit=4
    $region2: #{tpu_custom_call.1} parent=1 // loop_pre_header
      _
    $region3: #{tpu_custom_call.1} parent=1 // loop_header
      %s29 = sphi 0, %s33
      %p30 = scmp.ge.s32.totalorder %s29, 4
      %s37 = sphi 0, %s37
      %s39 = sphi 0, %s37
      %s40 = sphi 0, %s39
      %s54 = sphi 0, %s40
      %s58 = sphi 0, %s58
      %s60 = sphi 0, %s58
      %s61 = sphi 0, %s60
      %s75 = sphi 0, %s61
      %s79 = sphi 0, %s79
      %s81 = sphi 0, %s79
      %s82 = sphi 0, %s81
      %s96 = sphi 0, %s82
      %s100 = sphi 0, %s100
      %s102 = sphi 0, %s100
      %s103 = sphi 0, %s102
      %s117 = sphi 0, %s103
      %s123 = sphi 0, %s125
      %s126 = sphi 0, %s123
      %s127 = sphi 0, %s126
      %s143 = sphi 0, %s127
      %s149 = sphi 0, %s151
      %s152 = sphi 0, %s149
      %s153 = sphi 0, %s152
      %s169 = sphi 0, %s153
      %s175 = sphi 0, %s177
      %s178 = sphi 0, %s175
      %s179 = sphi 0, %s178
      %s195 = sphi 0, %s179
      %s201 = sphi 0, %s203
      %s204 = sphi 0, %s201
      %s205 = sphi 0, %s204
      %s221 = sphi 0, %s205
      %s227 = sphi 0, %s229
      %s230 = sphi 0, %s227
      %s231 = sphi 0, %s230
      %s247 = sphi 0, %s231
      %s253 = sphi 0, %s255
      %s256 = sphi 0, %s253
      %s257 = sphi 0, %s256
      %s273 = sphi 0, %s257
      %s279 = sphi 0, %s281
      %s282 = sphi 0, %s279
      %s283 = sphi 0, %s282
      %s299 = sphi 0, %s283
      %s305 = sphi 0, %s307
      %s308 = sphi 0, %s305
      %s309 = sphi 0, %s308
      %s325 = sphi 0, %s309
      %s331 = sphi 0, %s333
      %s334 = sphi 0, %s331
      %s335 = sphi 0, %s334
      %s351 = sphi 0, %s335
      %s357 = sphi 0, %s359
      %s360 = sphi 0, %s357
      %s361 = sphi 0, %s360
      %s377 = sphi 0, %s361
      %s383 = sphi 0, %s385
      %s386 = sphi 0, %s383
      %s387 = sphi 0, %s386
      %s403 = sphi 0, %s387
      %s409 = sphi 0, %s411
      %s412 = sphi 0, %s409
      %s413 = sphi 0, %s412
      %s429 = sphi 0, %s413
      %s433 = sphi 0, %s433
      %s435 = sphi 0, %s433
      %s436 = sphi 0, %s435
      %s450 = sphi 0, %s436
      %s454 = sphi 0, %s454
      %s456 = sphi 0, %s454
      %s457 = sphi 0, %s456
      %s471 = sphi 0, %s457
      %s475 = sphi 0, %s475
      %s477 = sphi 0, %s475
      %s478 = sphi 0, %s477
      %s492 = sphi 0, %s478
      %s496 = sphi 0, %s496
      %s498 = sphi 0, %s496
      %s499 = sphi 0, %s498
      %s513 = sphi 0, %s499
      %s517 = sphi 0, %s517
      %s519 = sphi 0, %s517
      %s520 = sphi 0, %s519
      %s534 = sphi 0, %s520
      %s538 = sphi 0, %s538
      %s540 = sphi 0, %s538
      %s541 = sphi 0, %s540
      %s555 = sphi 0, %s541
      %s559 = sphi 0, %s559
      %s561 = sphi 0, %s559
      %s562 = sphi 0, %s561
      %s576 = sphi 0, %s562
    $region4: #{tpu_custom_call.1} parent=1 // loop_header_branch
      %32 = sbr.rel (%p30) target = $region8
    $region5: #{tpu_custom_call.1} parent=1 // loop_body
      %s34 = ssub.s32 %s29, 1
      %s35 = ssub.s32 %s29, 2
      %s36 = sadd.s32 %s29, 1
      %s38 = sadd.s32 %s37, 1
      %p41 = scmp.eq.s32.totalorder %s29, 1
      %p42 = scmp.ne.s32.totalorder %s37, %s39
      %p43 = scmp.eq.s32.totalorder %s29, 0
      %p44 = por %p42, %p43
      %p45 = scmp.ne.s32.totalorder %s37, %s39
      %p46 = scmp.eq.s32.totalorder %s34, 1
      %p47 = por %p45, %p46
      %p48 = scmp.ne.s32.totalorder %s39, %s40
      %p49 = scmp.eq.s32.totalorder %s34, 0
      %p50 = por %p48, %p49
      %p51 = scmp.ne.s32.totalorder %s39, %s40
      %p52 = scmp.eq.s32.totalorder %s35, 1
      %p53 = por %p51, %p52
      %p55 = scmp.ne.s32.totalorder %s40, %s54
      %p56 = scmp.eq.s32.totalorder %s35, 0
      %p57 = por %p55, %p56
      %s59 = sadd.s32 %s58, 1
      %p62 = scmp.eq.s32.totalorder %s29, 1
      %p63 = scmp.ne.s32.totalorder %s58, %s60
      %p64 = scmp.eq.s32.totalorder %s29, 0
      %p65 = por %p63, %p64
      %p66 = scmp.ne.s32.totalorder %s58, %s60
      %p67 = scmp.eq.s32.totalorder %s34, 1
      %p68 = por %p66, %p67
      %p69 = scmp.ne.s32.totalorder %s60, %s61
      %p70 = scmp.eq.s32.totalorder %s34, 0
      %p71 = por %p69, %p70
      %p72 = scmp.ne.s32.totalorder %s60, %s61
      %p73 = scmp.eq.s32.totalorder %s35, 1
      %p74 = por %p72, %p73
      %p76 = scmp.ne.s32.totalorder %s61, %s75
      %p77 = scmp.eq.s32.totalorder %s35, 0
      %p78 = por %p76, %p77
      %s80 = sadd.s32 %s79, 1
      %p83 = scmp.eq.s32.totalorder %s29, 1
      %p84 = scmp.ne.s32.totalorder %s79, %s81
      %p85 = scmp.eq.s32.totalorder %s29, 0
      %p86 = por %p84, %p85
      %p87 = scmp.ne.s32.totalorder %s79, %s81
      %p88 = scmp.eq.s32.totalorder %s34, 1
      %p89 = por %p87, %p88
      %p90 = scmp.ne.s32.totalorder %s81, %s82
      %p91 = scmp.eq.s32.totalorder %s34, 0
      %p92 = por %p90, %p91
      %p93 = scmp.ne.s32.totalorder %s81, %s82
      %p94 = scmp.eq.s32.totalorder %s35, 1
      %p95 = por %p93, %p94
      %p97 = scmp.ne.s32.totalorder %s82, %s96
      %p98 = scmp.eq.s32.totalorder %s35, 0
      %p99 = por %p97, %p98
      %s101 = sadd.s32 %s100, 1
      %p104 = scmp.eq.s32.totalorder %s29, 1
      %p105 = scmp.ne.s32.totalorder %s100, %s102
      %p106 = scmp.eq.s32.totalorder %s29, 0
      %p107 = por %p105, %p106
      %p108 = scmp.ne.s32.totalorder %s100, %s102
      %p109 = scmp.eq.s32.totalorder %s34, 1
      %p110 = por %p108, %p109
      %p111 = scmp.ne.s32.totalorder %s102, %s103
      %p112 = scmp.eq.s32.totalorder %s34, 0
      %p113 = por %p111, %p112
      %p114 = scmp.ne.s32.totalorder %s102, %s103
      %p115 = scmp.eq.s32.totalorder %s35, 1
      %p116 = por %p114, %p115
      %p118 = scmp.ne.s32.totalorder %s103, %s117
      %p119 = scmp.eq.s32.totalorder %s35, 0
      %p120 = por %p118, %p119
      %s121 = ssub.s32 %s29, %s36
      %p122 = scmp.eq.s32.totalorder %s121, 0
      %s124 = sadd.s32 %s123, 1
      %s125 = scalar_select %p122, %s123, %s124
      %p128 = pneg %p122
      %p129 = scmp.eq.s32.totalorder %s29, 1
      %p130 = por %p128, %p129
      %p131 = scmp.ne.s32.totalorder %s123, %s126
      %p132 = scmp.eq.s32.totalorder %s29, 0
      %p133 = por %p131, %p132
      %p134 = scmp.ne.s32.totalorder %s123, %s126
      %p135 = scmp.eq.s32.totalorder %s34, 1
      %p136 = por %p134, %p135
      %p137 = scmp.ne.s32.totalorder %s126, %s127
      %p138 = scmp.eq.s32.totalorder %s34, 0
      %p139 = por %p137, %p138
      %p140 = scmp.ne.s32.totalorder %s126, %s127
      %p141 = scmp.eq.s32.totalorder %s35, 1
      %p142 = por %p140, %p141
      %p144 = scmp.ne.s32.totalorder %s127, %s143
      %p145 = scmp.eq.s32.totalorder %s35, 0
      %p146 = por %p144, %p145
      %s147 = ssub.s32 %s29, %s36
      %p148 = scmp.eq.s32.totalorder %s147, 0
      %s150 = sadd.s32 %s149, 1
      %s151 = scalar_select %p148, %s149, %s150
      %p154 = pneg %p148
      %p155 = scmp.eq.s32.totalorder %s29, 1
      %p156 = por %p154, %p155
      %p157 = scmp.ne.s32.totalorder %s149, %s152
      %p158 = scmp.eq.s32.totalorder %s29, 0
      %p159 = por %p157, %p158
      %p160 = scmp.ne.s32.totalorder %s149, %s152
      %p161 = scmp.eq.s32.totalorder %s34, 1
      %p162 = por %p160, %p161
      %p163 = scmp.ne.s32.totalorder %s152, %s153
      %p164 = scmp.eq.s32.totalorder %s34, 0
      %p165 = por %p163, %p164
      %p166 = scmp.ne.s32.totalorder %s152, %s153
      %p167 = scmp.eq.s32.totalorder %s35, 1
      %p168 = por %p166, %p167
      %p170 = scmp.ne.s32.totalorder %s153, %s169
      %p171 = scmp.eq.s32.totalorder %s35, 0
      %p172 = por %p170, %p171
      %s173 = ssub.s32 %s29, %s36
      %p174 = scmp.eq.s32.totalorder %s173, 0
      %s176 = sadd.s32 %s175, 1
      %s177 = scalar_select %p174, %s175, %s176
      %p180 = pneg %p174
      %p181 = scmp.eq.s32.totalorder %s29, 1
      %p182 = por %p180, %p181
      %p183 = scmp.ne.s32.totalorder %s175, %s178
      %p184 = scmp.eq.s32.totalorder %s29, 0
      %p185 = por %p183, %p184
      %p186 = scmp.ne.s32.totalorder %s175, %s178
      %p187 = scmp.eq.s32.totalorder %s34, 1
      %p188 = por %p186, %p187
      %p189 = scmp.ne.s32.totalorder %s178, %s179
      %p190 = scmp.eq.s32.totalorder %s34, 0
      %p191 = por %p189, %p190
      %p192 = scmp.ne.s32.totalorder %s178, %s179
      %p193 = scmp.eq.s32.totalorder %s35, 1
      %p194 = por %p192, %p193
      %p196 = scmp.ne.s32.totalorder %s179, %s195
      %p197 = scmp.eq.s32.totalorder %s35, 0
      %p198 = por %p196, %p197
      %s199 = ssub.s32 %s29, %s36
      %p200 = scmp.eq.s32.totalorder %s199, 0
      %s202 = sadd.s32 %s201, 1
      %s203 = scalar_select %p200, %s201, %s202
      %p206 = pneg %p200
      %p207 = scmp.eq.s32.totalorder %s29, 1
      %p208 = por %p206, %p207
      %p209 = scmp.ne.s32.totalorder %s201, %s204
      %p210 = scmp.eq.s32.totalorder %s29, 0
      %p211 = por %p209, %p210
      %p212 = scmp.ne.s32.totalorder %s201, %s204
      %p213 = scmp.eq.s32.totalorder %s34, 1
      %p214 = por %p212, %p213
      %p215 = scmp.ne.s32.totalorder %s204, %s205
      %p216 = scmp.eq.s32.totalorder %s34, 0
      %p217 = por %p215, %p216
      %p218 = scmp.ne.s32.totalorder %s204, %s205
      %p219 = scmp.eq.s32.totalorder %s35, 1
      %p220 = por %p218, %p219
      %p222 = scmp.ne.s32.totalorder %s205, %s221
      %p223 = scmp.eq.s32.totalorder %s35, 0
      %p224 = por %p222, %p223
      %s225 = ssub.s32 %s29, %s36
      %p226 = scmp.eq.s32.totalorder %s225, 0
      %s228 = sadd.s32 %s227, 1
      %s229 = scalar_select %p226, %s227, %s228
      %p232 = pneg %p226
      %p233 = scmp.eq.s32.totalorder %s29, 1
      %p234 = por %p232, %p233
      %p235 = scmp.ne.s32.totalorder %s227, %s230
      %p236 = scmp.eq.s32.totalorder %s29, 0
      %p237 = por %p235, %p236
      %p238 = scmp.ne.s32.totalorder %s227, %s230
      %p239 = scmp.eq.s32.totalorder %s34, 1
      %p240 = por %p238, %p239
      %p241 = scmp.ne.s32.totalorder %s230, %s231
      %p242 = scmp.eq.s32.totalorder %s34, 0
      %p243 = por %p241, %p242
      %p244 = scmp.ne.s32.totalorder %s230, %s231
      %p245 = scmp.eq.s32.totalorder %s35, 1
      %p246 = por %p244, %p245
      %p248 = scmp.ne.s32.totalorder %s231, %s247
      %p249 = scmp.eq.s32.totalorder %s35, 0
      %p250 = por %p248, %p249
      %s251 = ssub.s32 %s29, %s36
      %p252 = scmp.eq.s32.totalorder %s251, 0
      %s254 = sadd.s32 %s253, 1
      %s255 = scalar_select %p252, %s253, %s254
      %p258 = pneg %p252
      %p259 = scmp.eq.s32.totalorder %s29, 1
      %p260 = por %p258, %p259
      %p261 = scmp.ne.s32.totalorder %s253, %s256
      %p262 = scmp.eq.s32.totalorder %s29, 0
      %p263 = por %p261, %p262
      %p264 = scmp.ne.s32.totalorder %s253, %s256
      %p265 = scmp.eq.s32.totalorder %s34, 1
      %p266 = por %p264, %p265
      %p267 = scmp.ne.s32.totalorder %s256, %s257
      %p268 = scmp.eq.s32.totalorder %s34, 0
      %p269 = por %p267, %p268
      %p270 = scmp.ne.s32.totalorder %s256, %s257
      %p271 = scmp.eq.s32.totalorder %s35, 1
      %p272 = por %p270, %p271
      %p274 = scmp.ne.s32.totalorder %s257, %s273
      %p275 = scmp.eq.s32.totalorder %s35, 0
      %p276 = por %p274, %p275
      %s277 = ssub.s32 %s29, %s36
      %p278 = scmp.eq.s32.totalorder %s277, 0
      %s280 = sadd.s32 %s279, 1
      %s281 = scalar_select %p278, %s279, %s280
      %p284 = pneg %p278
      %p285 = scmp.eq.s32.totalorder %s29, 1
      %p286 = por %p284, %p285
      %p287 = scmp.ne.s32.totalorder %s279, %s282
      %p288 = scmp.eq.s32.totalorder %s29, 0
      %p289 = por %p287, %p288
      %p290 = scmp.ne.s32.totalorder %s279, %s282
      %p291 = scmp.eq.s32.totalorder %s34, 1
      %p292 = por %p290, %p291
      %p293 = scmp.ne.s32.totalorder %s282, %s283
      %p294 = scmp.eq.s32.totalorder %s34, 0
      %p295 = por %p293, %p294
      %p296 = scmp.ne.s32.totalorder %s282, %s283
      %p297 = scmp.eq.s32.totalorder %s35, 1
      %p298 = por %p296, %p297
      %p300 = scmp.ne.s32.totalorder %s283, %s299
      %p301 = scmp.eq.s32.totalorder %s35, 0
      %p302 = por %p300, %p301
      %s303 = ssub.s32 %s29, %s36
      %p304 = scmp.eq.s32.totalorder %s303, 0
      %s306 = sadd.s32 %s305, 1
      %s307 = scalar_select %p304, %s305, %s306
      %p310 = pneg %p304
      %p311 = scmp.eq.s32.totalorder %s29, 1
      %p312 = por %p310, %p311
      %p313 = scmp.ne.s32.totalorder %s305, %s308
      %p314 = scmp.eq.s32.totalorder %s29, 0
      %p315 = por %p313, %p314
      %p316 = scmp.ne.s32.totalorder %s305, %s308
      %p317 = scmp.eq.s32.totalorder %s34, 1
      %p318 = por %p316, %p317
      %p319 = scmp.ne.s32.totalorder %s308, %s309
      %p320 = scmp.eq.s32.totalorder %s34, 0
      %p321 = por %p319, %p320
      %p322 = scmp.ne.s32.totalorder %s308, %s309
      %p323 = scmp.eq.s32.totalorder %s35, 1
      %p324 = por %p322, %p323
      %p326 = scmp.ne.s32.totalorder %s309, %s325
      %p327 = scmp.eq.s32.totalorder %s35, 0
      %p328 = por %p326, %p327
      %s329 = ssub.s32 %s29, %s36
      %p330 = scmp.eq.s32.totalorder %s329, 0
      %s332 = sadd.s32 %s331, 1
      %s333 = scalar_select %p330, %s331, %s332
      %p336 = pneg %p330
      %p337 = scmp.eq.s32.totalorder %s29, 1
      %p338 = por %p336, %p337
      %p339 = scmp.ne.s32.totalorder %s331, %s334
      %p340 = scmp.eq.s32.totalorder %s29, 0
      %p341 = por %p339, %p340
      %p342 = scmp.ne.s32.totalorder %s331, %s334
      %p343 = scmp.eq.s32.totalorder %s34, 1
      %p344 = por %p342, %p343
      %p345 = scmp.ne.s32.totalorder %s334, %s335
      %p346 = scmp.eq.s32.totalorder %s34, 0
      %p347 = por %p345, %p346
      %p348 = scmp.ne.s32.totalorder %s334, %s335
      %p349 = scmp.eq.s32.totalorder %s35, 1
      %p350 = por %p348, %p349
      %p352 = scmp.ne.s32.totalorder %s335, %s351
      %p353 = scmp.eq.s32.totalorder %s35, 0
      %p354 = por %p352, %p353
      %s355 = ssub.s32 %s29, %s36
      %p356 = scmp.eq.s32.totalorder %s355, 0
      %s358 = sadd.s32 %s357, 1
      %s359 = scalar_select %p356, %s357, %s358
      %p362 = pneg %p356
      %p363 = scmp.eq.s32.totalorder %s29, 1
      %p364 = por %p362, %p363
      %p365 = scmp.ne.s32.totalorder %s357, %s360
      %p366 = scmp.eq.s32.totalorder %s29, 0
      %p367 = por %p365, %p366
      %p368 = scmp.ne.s32.totalorder %s357, %s360
      %p369 = scmp.eq.s32.totalorder %s34, 1
      %p370 = por %p368, %p369
      %p371 = scmp.ne.s32.totalorder %s360, %s361
      %p372 = scmp.eq.s32.totalorder %s34, 0
      %p373 = por %p371, %p372
      %p374 = scmp.ne.s32.totalorder %s360, %s361
      %p375 = scmp.eq.s32.totalorder %s35, 1
      %p376 = por %p374, %p375
      %p378 = scmp.ne.s32.totalorder %s361, %s377
      %p379 = scmp.eq.s32.totalorder %s35, 0
      %p380 = por %p378, %p379
      %s381 = ssub.s32 %s29, %s36
      %p382 = scmp.eq.s32.totalorder %s381, 0
      %s384 = sadd.s32 %s383, 1
      %s385 = scalar_select %p382, %s383, %s384
      %p388 = pneg %p382
      %p389 = scmp.eq.s32.totalorder %s29, 1
      %p390 = por %p388, %p389
      %p391 = scmp.ne.s32.totalorder %s383, %s386
      %p392 = scmp.eq.s32.totalorder %s29, 0
      %p393 = por %p391, %p392
      %p394 = scmp.ne.s32.totalorder %s383, %s386
      %p395 = scmp.eq.s32.totalorder %s34, 1
      %p396 = por %p394, %p395
      %p397 = scmp.ne.s32.totalorder %s386, %s387
      %p398 = scmp.eq.s32.totalorder %s34, 0
      %p399 = por %p397, %p398
      %p400 = scmp.ne.s32.totalorder %s386, %s387
      %p401 = scmp.eq.s32.totalorder %s35, 1
      %p402 = por %p400, %p401
      %p404 = scmp.ne.s32.totalorder %s387, %s403
      %p405 = scmp.eq.s32.totalorder %s35, 0
      %p406 = por %p404, %p405
      %s407 = ssub.s32 %s29, %s36
      %p408 = scmp.eq.s32.totalorder %s407, 0
      %s410 = sadd.s32 %s409, 1
      %s411 = scalar_select %p408, %s409, %s410
      %p414 = pneg %p408
      %p415 = scmp.eq.s32.totalorder %s29, 1
      %p416 = por %p414, %p415
      %p417 = scmp.ne.s32.totalorder %s409, %s412
      %p418 = scmp.eq.s32.totalorder %s29, 0
      %p419 = por %p417, %p418
      %p420 = scmp.ne.s32.totalorder %s409, %s412
      %p421 = scmp.eq.s32.totalorder %s34, 1
      %p422 = por %p420, %p421
      %p423 = scmp.ne.s32.totalorder %s412, %s413
      %p424 = scmp.eq.s32.totalorder %s34, 0
      %p425 = por %p423, %p424
      %p426 = scmp.ne.s32.totalorder %s412, %s413
      %p427 = scmp.eq.s32.totalorder %s35, 1
      %p428 = por %p426, %p427
      %p430 = scmp.ne.s32.totalorder %s413, %s429
      %p431 = scmp.eq.s32.totalorder %s35, 0
      %p432 = por %p430, %p431
      %s434 = sadd.s32 %s433, 1
      %p437 = scmp.eq.s32.totalorder %s29, 1
      %p438 = scmp.ne.s32.totalorder %s433, %s435
      %p439 = scmp.eq.s32.totalorder %s29, 0
      %p440 = por %p438, %p439
      %p441 = scmp.ne.s32.totalorder %s433, %s435
      %p442 = scmp.eq.s32.totalorder %s34, 1
      %p443 = por %p441, %p442
      %p444 = scmp.ne.s32.totalorder %s435, %s436
      %p445 = scmp.eq.s32.totalorder %s34, 0
      %p446 = por %p444, %p445
      %p447 = scmp.ne.s32.totalorder %s435, %s436
      %p448 = scmp.eq.s32.totalorder %s35, 1
      %p449 = por %p447, %p448
      %p451 = scmp.ne.s32.totalorder %s436, %s450
      %p452 = scmp.eq.s32.totalorder %s35, 0
      %p453 = por %p451, %p452
      %s455 = sadd.s32 %s454, 1
      %p458 = scmp.eq.s32.totalorder %s29, 1
      %p459 = scmp.ne.s32.totalorder %s454, %s456
      %p460 = scmp.eq.s32.totalorder %s29, 0
      %p461 = por %p459, %p460
      %p462 = scmp.ne.s32.totalorder %s454, %s456
      %p463 = scmp.eq.s32.totalorder %s34, 1
      %p464 = por %p462, %p463
      %p465 = scmp.ne.s32.totalorder %s456, %s457
      %p466 = scmp.eq.s32.totalorder %s34, 0
      %p467 = por %p465, %p466
      %p468 = scmp.ne.s32.totalorder %s456, %s457
      %p469 = scmp.eq.s32.totalorder %s35, 1
      %p470 = por %p468, %p469
      %p472 = scmp.ne.s32.totalorder %s457, %s471
      %p473 = scmp.eq.s32.totalorder %s35, 0
      %p474 = por %p472, %p473
      %s476 = sadd.s32 %s475, 1
      %p479 = scmp.eq.s32.totalorder %s29, 1
      %p480 = scmp.ne.s32.totalorder %s475, %s477
      %p481 = scmp.eq.s32.totalorder %s29, 0
      %p482 = por %p480, %p481
      %p483 = scmp.ne.s32.totalorder %s475, %s477
      %p484 = scmp.eq.s32.totalorder %s34, 1
      %p485 = por %p483, %p484
      %p486 = scmp.ne.s32.totalorder %s477, %s478
      %p487 = scmp.eq.s32.totalorder %s34, 0
      %p488 = por %p486, %p487
      %p489 = scmp.ne.s32.totalorder %s477, %s478
      %p490 = scmp.eq.s32.totalorder %s35, 1
      %p491 = por %p489, %p490
      %p493 = scmp.ne.s32.totalorder %s478, %s492
      %p494 = scmp.eq.s32.totalorder %s35, 0
      %p495 = por %p493, %p494
      %s497 = sadd.s32 %s496, 1
      %p500 = scmp.eq.s32.totalorder %s29, 1
      %p501 = scmp.ne.s32.totalorder %s496, %s498
      %p502 = scmp.eq.s32.totalorder %s29, 0
      %p503 = por %p501, %p502
      %p504 = scmp.ne.s32.totalorder %s496, %s498
      %p505 = scmp.eq.s32.totalorder %s34, 1
      %p506 = por %p504, %p505
      %p507 = scmp.ne.s32.totalorder %s498, %s499
      %p508 = scmp.eq.s32.totalorder %s34, 0
      %p509 = por %p507, %p508
      %p510 = scmp.ne.s32.totalorder %s498, %s499
      %p511 = scmp.eq.s32.totalorder %s35, 1
      %p512 = por %p510, %p511
      %p514 = scmp.ne.s32.totalorder %s499, %s513
      %p515 = scmp.eq.s32.totalorder %s35, 0
      %p516 = por %p514, %p515
      %s518 = sadd.s32 %s517, 1
      %p521 = scmp.eq.s32.totalorder %s29, 1
      %p522 = scmp.ne.s32.totalorder %s517, %s519
      %p523 = scmp.eq.s32.totalorder %s29, 0
      %p524 = por %p522, %p523
      %p525 = scmp.ne.s32.totalorder %s517, %s519
      %p526 = scmp.eq.s32.totalorder %s34, 1
      %p527 = por %p525, %p526
      %p528 = scmp.ne.s32.totalorder %s519, %s520
      %p529 = scmp.eq.s32.totalorder %s34, 0
      %p530 = por %p528, %p529
      %p531 = scmp.ne.s32.totalorder %s519, %s520
      %p532 = scmp.eq.s32.totalorder %s35, 1
      %p533 = por %p531, %p532
      %p535 = scmp.ne.s32.totalorder %s520, %s534
      %p536 = scmp.eq.s32.totalorder %s35, 0
      %p537 = por %p535, %p536
      %s539 = sadd.s32 %s538, 1
      %p542 = scmp.eq.s32.totalorder %s29, 1
      %p543 = scmp.ne.s32.totalorder %s538, %s540
      %p544 = scmp.eq.s32.totalorder %s29, 0
      %p545 = por %p543, %p544
      %p546 = scmp.ne.s32.totalorder %s538, %s540
      %p547 = scmp.eq.s32.totalorder %s34, 1
      %p548 = por %p546, %p547
      %p549 = scmp.ne.s32.totalorder %s540, %s541
      %p550 = scmp.eq.s32.totalorder %s34, 0
      %p551 = por %p549, %p550
      %p552 = scmp.ne.s32.totalorder %s540, %s541
      %p553 = scmp.eq.s32.totalorder %s35, 1
      %p554 = por %p552, %p553
      %p556 = scmp.ne.s32.totalorder %s541, %s555
      %p557 = scmp.eq.s32.totalorder %s35, 0
      %p558 = por %p556, %p557
      %s560 = sadd.s32 %s559, 1
      %p563 = scmp.eq.s32.totalorder %s29, 1
      %p564 = scmp.ne.s32.totalorder %s559, %s561
      %p565 = scmp.eq.s32.totalorder %s29, 0
      %p566 = por %p564, %p565
      %p567 = scmp.ne.s32.totalorder %s559, %s561
      %p568 = scmp.eq.s32.totalorder %s34, 1
      %p569 = por %p567, %p568
      %p570 = scmp.ne.s32.totalorder %s561, %s562
      %p571 = scmp.eq.s32.totalorder %s34, 0
      %p572 = por %p570, %p571
      %p573 = scmp.ne.s32.totalorder %s561, %s562
      %p574 = scmp.eq.s32.totalorder %s35, 1
      %p575 = por %p573, %p574
      %p577 = scmp.ne.s32.totalorder %s562, %s576
      %p578 = scmp.eq.s32.totalorder %s35, 0
      %p579 = por %p577, %p578
      %p580 = scmp.le.s32.totalorder 1, %s29
      %p581 = scmp.lt.s32.totalorder %s29, 3
      %p582 = pnand %p580, %p581
      %p583 = pneg %p582
      // Predicated region
      $region9: #{tpu_custom_call.1} parent=5 // pred_check
        _
      $region10: #{tpu_custom_call.1} parent=5 // pred_check_branch
        %585 = sbr.rel (%p582) target = $region12
      $region11: #{tpu_custom_call.1} parent=5 // pred_region
        %s586 = ssub.s32 %s29, 1
        // Predicated region
        $region13: #{tpu_custom_call.1} parent=11 // pred_check
          %p587 = pneg %p50
        $region14: #{tpu_custom_call.1} parent=11 // pred_check_branch
          %589 = sbr.rel (%p587) target = $region16
        $region15: #{tpu_custom_call.1} parent=11 // pred_region
          _
        $region16: #{tpu_custom_call.1} parent=11 // pred_fallthru
          _
        // Predicated region
        $region17: #{tpu_custom_call.1} parent=11 // pred_check
          %p590 = pneg %p71
        $region18: #{tpu_custom_call.1} parent=11 // pred_check_branch
          %592 = sbr.rel (%p590) target = $region20
        $region19: #{tpu_custom_call.1} parent=11 // pred_region
          _
        $region20: #{tpu_custom_call.1} parent=11 // pred_fallthru
          _
        // Predicated region
        $region21: #{tpu_custom_call.1} parent=11 // pred_check
          %p593 = pneg %p92
        $region22: #{tpu_custom_call.1} parent=11 // pred_check_branch
          %595 = sbr.rel (%p593) target = $region24
        $region23: #{tpu_custom_call.1} parent=11 // pred_region
          _
        $region24: #{tpu_custom_call.1} parent=11 // pred_fallthru
          _
        // Predicated region
        $region25: #{tpu_custom_call.1} parent=11 // pred_check
          %p596 = pneg %p113
        $region26: #{tpu_custom_call.1} parent=11 // pred_check_branch
          %598 = sbr.rel (%p596) target = $region28
        $region27: #{tpu_custom_call.1} parent=11 // pred_region
          _
        $region28: #{tpu_custom_call.1} parent=11 // pred_fallthru
          _
        // Predicated region
        $region29: #{tpu_custom_call.1} parent=11 // pred_check
          %p599 = pneg %p446
        $region30: #{tpu_custom_call.1} parent=11 // pred_check_branch
          %601 = sbr.rel (%p599) target = $region32
        $region31: #{tpu_custom_call.1} parent=11 // pred_region
          _
        $region32: #{tpu_custom_call.1} parent=11 // pred_fallthru
          _
        // Predicated region
        $region33: #{tpu_custom_call.1} parent=11 // pred_check
          %p602 = pneg %p467
        $region34: #{tpu_custom_call.1} parent=11 // pred_check_branch
          %604 = sbr.rel (%p602) target = $region36
        $region35: #{tpu_custom_call.1} parent=11 // pred_region
          _
        $region36: #{tpu_custom_call.1} parent=11 // pred_fallthru
          _
        // Predicated region
        $region37: #{tpu_custom_call.1} parent=11 // pred_check
          %p605 = pneg %p488
        $region38: #{tpu_custom_call.1} parent=11 // pred_check_branch
          %607 = sbr.rel (%p605) target = $region40
        $region39: #{tpu_custom_call.1} parent=11 // pred_region
          _
        $region40: #{tpu_custom_call.1} parent=11 // pred_fallthru
          _
        // Predicated region
        $region41: #{tpu_custom_call.1} parent=11 // pred_check
          %p608 = pneg %p509
        $region42: #{tpu_custom_call.1} parent=11 // pred_check_branch
          %610 = sbr.rel (%p608) target = $region44
        $region43: #{tpu_custom_call.1} parent=11 // pred_region
          _
        $region44: #{tpu_custom_call.1} parent=11 // pred_fallthru
          _
        // Predicated region
        $region45: #{tpu_custom_call.1} parent=11 // pred_check
          %p611 = pneg %p530
        $region46: #{tpu_custom_call.1} parent=11 // pred_check_branch
          %613 = sbr.rel (%p611) target = $region48
        $region47: #{tpu_custom_call.1} parent=11 // pred_region
          _
        $region48: #{tpu_custom_call.1} parent=11 // pred_fallthru
          _
        // Predicated region
        $region49: #{tpu_custom_call.1} parent=11 // pred_check
          %p614 = pneg %p551
        $region50: #{tpu_custom_call.1} parent=11 // pred_check_branch
          %616 = sbr.rel (%p614) target = $region52
        $region51: #{tpu_custom_call.1} parent=11 // pred_region
          _
        $region52: #{tpu_custom_call.1} parent=11 // pred_fallthru
          _
      $region12: #{tpu_custom_call.1} parent=5 // pred_fallthru
        _
      %p617 = scmp.lt.s32.totalorder %s29, 2
      // Predicated region
      $region53: #{tpu_custom_call.1} parent=5 // pred_check
        %p618 = pneg %p617
      $region54: #{tpu_custom_call.1} parent=5 // pred_check_branch
        %620 = sbr.rel (%p618) target = $region56
      $region55: #{tpu_custom_call.1} parent=5 // pred_region
        // Predicated region
        $region57: #{tpu_custom_call.1} parent=55 // pred_check
          %p621 = pneg %p133
        $region58: #{tpu_custom_call.1} parent=55 // pred_check_branch
          %623 = sbr.rel (%p621) target = $region60
        $region59: #{tpu_custom_call.1} parent=55 // pred_region
          %p624 = scmp.lt.s32.totalorder %s29, 1
          %s625 = scalar_select %p624, %s29, 1
          %s626 = smul.addr %s625, 4
          %s627 = smul.addr %s626, 4
          %s628 = scalar_lea.vmem %s4, %s627
        $region60: #{tpu_custom_call.1} parent=55 // pred_fallthru
          _
        // Predicated region
        $region61: #{tpu_custom_call.1} parent=55 // pred_check
          %p629 = pneg %p159
        $region62: #{tpu_custom_call.1} parent=55 // pred_check_branch
          %631 = sbr.rel (%p629) target = $region64
        $region63: #{tpu_custom_call.1} parent=55 // pred_region
          %p632 = scmp.lt.s32.totalorder %s29, 1
          %s633 = scalar_select %p632, %s29, 1
          %s634 = scalar_lea.vmem %s5, %s633
        $region64: #{tpu_custom_call.1} parent=55 // pred_fallthru
          _
        // Predicated region
        $region65: #{tpu_custom_call.1} parent=55 // pred_check
          %p635 = pneg %p185
        $region66: #{tpu_custom_call.1} parent=55 // pred_check_branch
          %637 = sbr.rel (%p635) target = $region68
        $region67: #{tpu_custom_call.1} parent=55 // pred_region
          %p638 = scmp.lt.s32.totalorder %s29, 1
          %s639 = scalar_select %p638, %s29, 1
          %s640 = smul.addr %s639, 4
          %s641 = smul.addr %s640, 4
          %s642 = scalar_lea.vmem %s6, %s641
        $region68: #{tpu_custom_call.1} parent=55 // pred_fallthru
          _
        // Predicated region
        $region69: #{tpu_custom_call.1} parent=55 // pred_check
          %p643 = pneg %p211
        $region70: #{tpu_custom_call.1} parent=55 // pred_check_branch
          %645 = sbr.rel (%p643) target = $region72
        $region71: #{tpu_custom_call.1} parent=55 // pred_region
          %p646 = scmp.lt.s32.totalorder %s29, 1
          %s647 = scalar_select %p646, %s29, 1
          %s648 = scalar_lea.vmem %s7, %s647
        $region72: #{tpu_custom_call.1} parent=55 // pred_fallthru
          _
        // Predicated region
        $region73: #{tpu_custom_call.1} parent=55 // pred_check
          %p649 = pneg %p237
        $region74: #{tpu_custom_call.1} parent=55 // pred_check_branch
          %651 = sbr.rel (%p649) target = $region76
        $region75: #{tpu_custom_call.1} parent=55 // pred_region
          %p652 = scmp.lt.s32.totalorder %s29, 1
          %s653 = scalar_select %p652, %s29, 1
          %s654 = scalar_lea.vmem %s8, %s653
        $region76: #{tpu_custom_call.1} parent=55 // pred_fallthru
          _
        // Predicated region
        $region77: #{tpu_custom_call.1} parent=55 // pred_check
          %p655 = pneg %p263
        $region78: #{tpu_custom_call.1} parent=55 // pred_check_branch
          %657 = sbr.rel (%p655) target = $region80
        $region79: #{tpu_custom_call.1} parent=55 // pred_region
          %p658 = scmp.lt.s32.totalorder %s29, 1
          %s659 = scalar_select %p658, %s29, 1
          %s660 = scalar_lea.vmem %s9, %s659
        $region80: #{tpu_custom_call.1} parent=55 // pred_fallthru
          _
        // Predicated region
        $region81: #{tpu_custom_call.1} parent=55 // pred_check
          %p661 = pneg %p289
        $region82: #{tpu_custom_call.1} parent=55 // pred_check_branch
          %663 = sbr.rel (%p661) target = $region84
        $region83: #{tpu_custom_call.1} parent=55 // pred_region
          %p664 = scmp.lt.s32.totalorder %s29, 1
          %s665 = scalar_select %p664, %s29, 1
          %s666 = smul.addr %s665, 4
          %s667 = smul.addr %s666, 4
          %s668 = scalar_lea.vmem %s10, %s667
        $region84: #{tpu_custom_call.1} parent=55 // pred_fallthru
          _
        // Predicated region
        $region85: #{tpu_custom_call.1} parent=55 // pred_check
          %p669 = pneg %p315
        $region86: #{tpu_custom_call.1} parent=55 // pred_check_branch
          %671 = sbr.rel (%p669) target = $region88
        $region87: #{tpu_custom_call.1} parent=55 // pred_region
          %p672 = scmp.lt.s32.totalorder %s29, 1
          %s673 = scalar_select %p672, %s29, 1
          %s674 = scalar_lea.vmem %s11, %s673
        $region88: #{tpu_custom_call.1} parent=55 // pred_fallthru
          _
        // Predicated region
        $region89: #{tpu_custom_call.1} parent=55 // pred_check
          %p675 = pneg %p341
        $region90: #{tpu_custom_call.1} parent=55 // pred_check_branch
          %677 = sbr.rel (%p675) target = $region92
        $region91: #{tpu_custom_call.1} parent=55 // pred_region
          %p678 = scmp.lt.s32.totalorder %s29, 1
          %s679 = scalar_select %p678, %s29, 1
          %s680 = smul.addr %s679, 8
          %s681 = smul.addr %s680, 4
          %s682 = scalar_lea.vmem %s12, %s681
        $region92: #{tpu_custom_call.1} parent=55 // pred_fallthru
          _
        // Predicated region
        $region93: #{tpu_custom_call.1} parent=55 // pred_check
          %p683 = pneg %p367
        $region94: #{tpu_custom_call.1} parent=55 // pred_check_branch
          %685 = sbr.rel (%p683) target = $region96
        $region95: #{tpu_custom_call.1} parent=55 // pred_region
          %p686 = scmp.lt.s32.totalorder %s29, 1
          %s687 = scalar_select %p686, %s29, 1
          %s688 = scalar_lea.vmem %s13, %s687
        $region96: #{tpu_custom_call.1} parent=55 // pred_fallthru
          _
        // Predicated region
        $region97: #{tpu_custom_call.1} parent=55 // pred_check
          %p689 = pneg %p393
        $region98: #{tpu_custom_call.1} parent=55 // pred_check_branch
          %691 = sbr.rel (%p689) target = $region100
        $region99: #{tpu_custom_call.1} parent=55 // pred_region
          %p692 = scmp.lt.s32.totalorder %s29, 1
          %s693 = scalar_select %p692, %s29, 1
          %s694 = scalar_lea.vmem %s14, %s693
        $region100: #{tpu_custom_call.1} parent=55 // pred_fallthru
          _
        // Predicated region
        $region101: #{tpu_custom_call.1} parent=55 // pred_check
          %p695 = pneg %p419
        $region102: #{tpu_custom_call.1} parent=55 // pred_check_branch
          %697 = sbr.rel (%p695) target = $region104
        $region103: #{tpu_custom_call.1} parent=55 // pred_region
          %p698 = scmp.lt.s32.totalorder %s29, 1
          %s699 = scalar_select %p698, %s29, 1
          %s700 = scalar_lea.vmem %s15, %s699
        $region104: #{tpu_custom_call.1} parent=55 // pred_fallthru
          _
      $region56: #{tpu_custom_call.1} parent=5 // pred_fallthru
        _
      %p701 = scmp.le.s32.totalorder 1, %s29
      %p702 = scmp.lt.s32.totalorder %s29, 3
      %p703 = pnand %p701, %p702
      %p704 = pneg %p703
      // Predicated region
      $region105: #{tpu_custom_call.1} parent=5 // pred_check
        _
      $region106: #{tpu_custom_call.1} parent=5 // pred_check_branch
        %706 = sbr.rel (%p703) target = $region108
      $region107: #{tpu_custom_call.1} parent=5 // pred_region
        %s707 = ssub.s32 %s29, 1
        %p708 = pneg %p50
        %p709 = pneg %p47
        %p710 = pneg %p71
        %p711 = pneg %p68
        %p712 = pneg %p92
        %p713 = pneg %p89
        %p714 = pneg %p113
        %p715 = pneg %p110
        %p716 = scmp.lt.s32.totalorder %s34, 1
        %s717 = scalar_select %p716, %s34, 1
        %s718 = smul.addr %s717, 4
        %s719 = smul.addr %s718, 4
        %s720 = scalar_lea.vmem %s4, %s719
        %p721 = pneg %p139
        %p722 = pneg %p136
        %p723 = scmp.lt.s32.totalorder %s34, 1
        %s724 = scalar_select %p723, %s34, 1
        %s725 = scalar_lea.vmem %s5, %s724
        %p726 = pneg %p165
        %p727 = pneg %p162
        %p728 = scmp.lt.s32.totalorder %s34, 1
        %s729 = scalar_select %p728, %s34, 1
        %s730 = smul.addr %s729, 4
        %s731 = smul.addr %s730, 4
        %s732 = scalar_lea.vmem %s6, %s731
        %p733 = pneg %p191
        %p734 = pneg %p188
        %p735 = scmp.lt.s32.totalorder %s34, 1
        %s736 = scalar_select %p735, %s34, 1
        %s737 = scalar_lea.vmem %s7, %s736
        %p738 = pneg %p217
        %p739 = pneg %p214
        %p740 = scmp.lt.s32.totalorder %s34, 1
        %s741 = scalar_select %p740, %s34, 1
        %s742 = scalar_lea.vmem %s8, %s741
        %p743 = pneg %p243
        %p744 = pneg %p240
        %p745 = scmp.lt.s32.totalorder %s34, 1
        %s746 = scalar_select %p745, %s34, 1
        %s747 = scalar_lea.vmem %s9, %s746
        %p748 = pneg %p269
        %p749 = pneg %p266
        %p750 = scmp.lt.s32.totalorder %s34, 1
        %s751 = scalar_select %p750, %s34, 1
        %s752 = smul.addr %s751, 4
        %s753 = smul.addr %s752, 4
        %s754 = scalar_lea.vmem %s10, %s753
        %p755 = pneg %p295
        %p756 = pneg %p292
        %p757 = scmp.lt.s32.totalorder %s34, 1
        %s758 = scalar_select %p757, %s34, 1
        %s759 = scalar_lea.vmem %s11, %s758
        %p760 = pneg %p321
        %p761 = pneg %p318
        %p762 = scmp.lt.s32.totalorder %s34, 1
        %s763 = scalar_select %p762, %s34, 1
        %s764 = smul.addr %s763, 8
        %s765 = smul.addr %s764, 4
        %s766 = scalar_lea.vmem %s12, %s765
        %p767 = pneg %p347
        %p768 = pneg %p344
        %p769 = scmp.lt.s32.totalorder %s34, 1
        %s770 = scalar_select %p769, %s34, 1
        %s771 = scalar_lea.vmem %s13, %s770
        %p772 = pneg %p373
        %p773 = pneg %p370
        %p774 = scmp.lt.s32.totalorder %s34, 1
        %s775 = scalar_select %p774, %s34, 1
        %s776 = scalar_lea.vmem %s14, %s775
        %p777 = pneg %p399
        %p778 = pneg %p396
        %p779 = scmp.lt.s32.totalorder %s34, 1
        %s780 = scalar_select %p779, %s34, 1
        %s781 = scalar_lea.vmem %s15, %s780
        %p782 = pneg %p425
        %p783 = pneg %p422
        %p784 = pneg %p446
        %p785 = pneg %p443
        %p786 = pneg %p467
        %p787 = pneg %p464
        %p788 = pneg %p488
        %p789 = pneg %p485
        %p790 = pneg %p509
        %p791 = pneg %p506
        %p792 = pneg %p530
        %p793 = pneg %p527
        %p794 = pneg %p551
        %p795 = pneg %p548
        %p796 = pneg %p572
        %p797 = pneg %p569
        %p798 = scmp.lt.s32.totalorder %s34, 1
        %s799 = scalar_select %p798, %s34, 1
        %s800 = smul.addr %s799, 4
        %s801 = smul.addr %s800, 4
        %s802 = scalar_lea.vmem %s4, %s801
        %p803 = scmp.lt.s32.totalorder %s34, 1
        %s804 = scalar_select %p803, %s34, 1
        %s805 = scalar_lea.vmem %s5, %s804
        %p806 = scmp.lt.s32.totalorder %s34, 1
        %s807 = scalar_select %p806, %s34, 1
        %s808 = smul.addr %s807, 4
        %s809 = smul.addr %s808, 4
        %s810 = scalar_lea.vmem %s6, %s809
        %p811 = scmp.lt.s32.totalorder %s34, 1
        %s812 = scalar_select %p811, %s34, 1
        %s813 = scalar_lea.vmem %s7, %s812
        %p814 = scmp.lt.s32.totalorder %s34, 1
        %s815 = scalar_select %p814, %s34, 1
        %s816 = scalar_lea.vmem %s8, %s815
        %p817 = scmp.lt.s32.totalorder %s34, 1
        %s818 = scalar_select %p817, %s34, 1
        %s819 = scalar_lea.vmem %s9, %s818
        %p820 = scmp.lt.s32.totalorder %s34, 1
        %s821 = scalar_select %p820, %s34, 1
        %s822 = smul.addr %s821, 4
        %s823 = smul.addr %s822, 4
        %s824 = scalar_lea.vmem %s10, %s823
        %p825 = scmp.lt.s32.totalorder %s34, 1
        %s826 = scalar_select %p825, %s34, 1
        %s827 = scalar_lea.vmem %s11, %s826
        %p828 = scmp.lt.s32.totalorder %s34, 1
        %s829 = scalar_select %p828, %s34, 1
        %s830 = smul.addr %s829, 8
        %s831 = smul.addr %s830, 4
        %s832 = scalar_lea.vmem %s12, %s831
        %p833 = scmp.lt.s32.totalorder %s34, 1
        %s834 = scalar_select %p833, %s34, 1
        %s835 = scalar_lea.vmem %s13, %s834
        %p836 = scmp.lt.s32.totalorder %s34, 1
        %s837 = scalar_select %p836, %s34, 1
        %s838 = scalar_lea.vmem %s14, %s837
        %p839 = scmp.lt.s32.totalorder %s34, 1
        %s840 = scalar_select %p839, %s34, 1
        %s841 = scalar_lea.vmem %s15, %s840
        %p843 = scmp.eq.s32.totalorder %s34, 0
        // Predicated region
        $region109: #{tpu_custom_call.1} parent=107 // pred_check
          %p844 = pneg %p843
        $region110: #{tpu_custom_call.1} parent=107 // pred_check_branch
          %846 = sbr.rel (%p844) target = $region112
        $region111: #{tpu_custom_call.1} parent=107 // pred_region
          %v847 = vld [vmem:[%s0] sm:$0xff]
          %v848 = vld [vmem:[%s0 + $0x8] sm:$0xff]
          %v849 = vld [vmem:[%s2] sm:$0x1]
          %v850 = vld [vmem:[%s3] sm:$0x1]
          %vm851 = vcmask 261120
          %v852 = vsel %vm851, %v847, 0.0
          %853 = vadd.xlane.f32.xlu0 %v852
          %v854 = vpop.xlane.xlu0 %853
          %v855 = vsel %vm851, %v848, 0.0
          %856 = vadd.xlane.f32.xlu0 %v855
          %v857 = vpop.xlane.xlu0 %856
          %v858 = vrcp.pop 32.0
          %v859 = vmul.f32 %v854, %v858
          %v860 = vmul.f32 %v857, %v858
          %v861 = vsub.f32 %v847, %v859
          %v862 = vsub.f32 %v848, %v860
          %v863 = vmul.f32 %v861, %v861
          %v864 = vmul.f32 %v862, %v862
          %v865 = vsel %vm851, %v863, 0.0
          %866 = vadd.xlane.f32.xlu0 %v865
          %v867 = vpop.xlane.xlu0 %866
          %v868 = vsel %vm851, %v864, 0.0
          %869 = vadd.xlane.f32.xlu0 %v868
          %v870 = vpop.xlane.xlu0 %869
          %v871 = vmul.f32 %v867, %v858
          %v872 = vmul.f32 %v870, %v858
          %v873 = vadd.f32 %v871, 1e-12
          %v874 = vadd.f32 %v872, 1e-12
          %v875 = vrsqrt.pop %v873
          %v876 = vrsqrt.pop %v874
          %v877 = vmul.f32 %v861, %v875
          %v878 = vmul.f32 %v862, %v876
          %v880 = vlaneseq
          %v881 = vshrl.u32 %v880, 7
          %v882 = vsub.s32 0, %v881
          %v883 = vrot.slane %v849, %v882
          %v885 = vmul.f32 %v877, %v883
          %v886 = vmul.f32 %v878, %v883
          %v888 = vlaneseq
          %v889 = vshrl.u32 %v888, 7
          %v890 = vsub.s32 0, %v889
          %v891 = vrot.slane %v850, %v890
          %v893 = vadd.f32 %v885, %v891
          %v894 = vadd.f32 %v886, %v891
          %895 = vst.msk [vmem:[#allocation2] sm:$0xff] %vm851, %v893
          %896 = vst.msk [vmem:[#allocation2 + $0x8] sm:$0xff] %vm851, %v894
        $region112: #{tpu_custom_call.1} parent=107 // pred_fallthru
          _
        %v897 = vld [vmem:[#allocation2] sm:$0xff]
        %v898 = vld [vmem:[#allocation2 + $0x8] sm:$0xff]
        %v899 = vpack.c.bf16 %v898, %v897
        %v900 = vld [vmem:[%s802] sm:$0xf]
        %v901 = vld [vmem:[%s802 + $0x4] sm:$0xf]
        %v902 = vld [vmem:[%s802 + $0x8] sm:$0xf]
        %v903 = vld [vmem:[%s802 + $0xc] sm:$0xf]
        %v904 = vld [vmem:[%s805] sm:$0x1]
        %v906 = vlaneseq
        %v907 = vshrl.u32 %v906, 7
        %v908 = vsub.s32 0, %v907
        %v909 = vrot.slane %v904, %v908
        %v915 = vunpack.c.l.b16 %v900
        %v916 = vunpack.c.l.b16 %v901
        %v917 = vunpack.c.l.b16 %v902
        %v918 = vunpack.c.l.b16 %v903
        %v919 = vpack.c.b16 %v916, %v915
        %v920 = vpack.c.b16 %v918, %v917
        %vm923 = vcmask 261120
        %v925 = vsel %vm923, %v899, 0
        %927 = vmatprep.subr.bf16.mxu0 0
        %928 = vmatpush1.bf16.msra.mxu0 0
        %929 = vmatprep.subr.bf16.mxu0 0
        %930 = vmatpush1.bf16.msra.mxu0 0
        %931 = vmatprep.subr.bf16.mxu0 0
        %932 = vmatpush1.bf16.msra.mxu0 0
        %933 = vmatprep.subr.bf16.mxu0 0
        %934 = vmatpush1.bf16.msra.mxu0 0
        %935 = vmatprep.subr.bf16.mxu0 0
        %936 = vmatpush1.bf16.msra.mxu0 0
        %937 = vmatprep.subr.bf16.mxu0 0
        %938 = vmatpush1.bf16.msra.mxu0 0
        %939 = vmatprep.subr.bf16.mxu0 0
        %940 = vmatpush1.bf16.msra.mxu0 %v920
        %941 = vmatprep.subr.bf16.mxu0 0
        %942 = vmatpush1.bf16.msra.mxu0 %v919
        %943 = vmatprep.subr.bf16.mxu0 0
        %944 = vmatpush2.bf16.msra.mxu0 0
        %945 = vmatprep.subr.bf16.mxu0 0
        %946 = vmatpush2.bf16.msra.mxu0 0
        %947 = vmatprep.subr.bf16.mxu0 0
        %948 = vmatpush2.bf16.msra.mxu0 0
        %949 = vmatprep.subr.bf16.mxu0 0
        %950 = vmatpush2.bf16.msra.mxu0 0
        %951 = vmatprep.subr.bf16.mxu0 0
        %952 = vmatpush2.bf16.msra.mxu0 0
        %953 = vmatprep.subr.bf16.mxu0 0
        %954 = vmatpush2.bf16.msra.mxu0 0
        %955 = vmatprep.subr.bf16.mxu0 0
        %956 = vmatpush2.bf16.msra.mxu0 0
        %957 = vmatprep.subr.bf16.mxu0 0
        %958 = vmatpush2.bf16.msra.mxu0 0
        %959 = vmatprep.mubr.bf16.mxu0 0
        %960 = vmatmul.mubr.bf16.gmra.mxu0 %v925
        %v961 = vpop.f32.mrf.mxu0
        %v962 = vadd.f32 %v909, %v961
        %v963 = vpop.f32.mrf.mxu0
        %v964 = vpop.f32.mrf.mxu0
        %v965 = vadd.f32 %v909, %v964
        %v966 = vpop.f32.mrf.mxu0
        %967 = vdwg.mxu0
        %v968 = vmul.f32 %v962, 0.25
        %v969 = vmul.f32 %v965, 0.25
        %972 = vrot.lane.b32.xlu0 %v968, 112
        %v973 = vpop.permute.xlu0 %972
        %974 = vrot.lane.b32.xlu0 %v969, 112
        %v975 = vpop.permute.xlu0 %974
        %v978 = vpack.c.bf16 %v968, %v968
        %v979 = vpack.c.bf16 %v969, %v969
        %v980 = vpack.c.bf16 %v973, %v973
        %v981 = vpack.c.bf16 %v975, %v975
        %984 = vrot.lane.b32.xlu0 %v962, 112
        %v985 = vpop.permute.xlu0 %984
        %986 = vrot.lane.b32.xlu0 %v965, 112
        %v987 = vpop.permute.xlu0 %986
        %v990 = vpack.c.bf16 %v962, %v962
        %v991 = vpack.c.bf16 %v965, %v965
        %v992 = vpack.c.bf16 %v985, %v985
        %v993 = vpack.c.bf16 %v987, %v987
        %v994 = vld [vmem:[%s1] sm:$0xf]
        %v997 = vunpack.c.l.s4 1966171168
        %v998 = vunpack.c.0.s8 %v997
        %v999 = vlaneseq
        %v1000 = vshrl.u32 %v999, 7
        %v1001 = vsub.s32 %v998, %v1000
        %v1002 = vrot.slane %v994, %v1001
        %v1003 = vcombine.high %v1002, %v1002
        %v1005 = vunpack.c.l.s4 1966171168
        %v1006 = vunpack.c.0.s8 %v1005
        %v1007 = vlaneseq
        %v1008 = vshrl.u32 %v1007, 7
        %v1009 = vsub.s32 %v1006, %v1008
        %v1010 = vrot.slane %v1002, %v1009
        %v1012 = vunpack.c.l.s4 1966171168
        %v1013 = vunpack.c.0.s8 %v1012
        %v1014 = vlaneseq
        %v1015 = vshrl.u32 %v1014, 7
        %v1016 = vsub.s32 %v1013, %v1015
        %v1017 = vrot.slane %v1003, %v1016
        %v1018 = vcombine.high %v1010, %v1010
        %v1019 = vcombine.high %v1017, %v1017
        %v1020 = vlaneseq
        %v1021 = vshrl.u32 %v1020, 7
        %v1022 = vsub.s32 0, %v1021
        %v1023 = vrot.slane %v1010, %v1022
        %v1024 = vlaneseq
        %v1025 = vshrl.u32 %v1024, 7
        %v1026 = vsub.s32 0, %v1025
        %v1027 = vrot.slane %v1017, %v1026
        %v1028 = vlaneseq
        %v1029 = vshrl.u32 %v1028, 7
        %v1030 = vsub.s32 0, %v1029
        %v1031 = vrot.slane %v1018, %v1030
        %v1032 = vlaneseq
        %v1033 = vshrl.u32 %v1032, 7
        %v1034 = vsub.s32 0, %v1033
        %v1035 = vrot.slane %v1019, %v1034
        %1041 = vrot.lane.b32.xlu0 %v990, 96
        %v1042 = vpop.permute.xlu0 %1041
        %vm1043 = vcmask 130048
        %v1045 = vsel %vm1043, %v978, 0
        %v1048 = vsel %vm1043, %v1042, 0
        %1050 = vmatprep.subr.bf16.mxu0 0
        %1051 = vmatpush1.bf16.xpose.msra.mxu0 0
        %1052 = vmatprep.subr.bf16.mxu0 0
        %1053 = vmatpush1.bf16.xpose.msra.mxu0 0
        %1054 = vmatprep.subr.bf16.mxu0 0
        %1055 = vmatpush1.bf16.xpose.msra.mxu0 0
        %1056 = vmatprep.subr.bf16.mxu0 0
        %1057 = vmatpush1.bf16.xpose.msra.mxu0 0
        %1058 = vmatprep.subr.bf16.mxu0 0
        %1059 = vmatpush1.bf16.xpose.msra.mxu0 0
        %1060 = vmatprep.subr.bf16.mxu0 0
        %1061 = vmatpush1.bf16.xpose.msra.mxu0 0
        %1062 = vmatprep.subr.bf16.mxu0 0
        %1063 = vmatpush1.bf16.xpose.msra.mxu0 0
        %1064 = vmatprep.subr.bf16.mxu0 0
        %1065 = vmatpush1.bf16.xpose.msra.mxu0 %v1048
        %1066 = vmatprep.subr.bf16.mxu0 0
        %1067 = vmatpush2.bf16.xpose.msra.mxu0 0
        %1068 = vmatprep.subr.bf16.mxu0 0
        %1069 = vmatpush2.bf16.xpose.msra.mxu0 0
        %1070 = vmatprep.subr.bf16.mxu0 0
        %1071 = vmatpush2.bf16.xpose.msra.mxu0 0
        %1072 = vmatprep.subr.bf16.mxu0 0
        %1073 = vmatpush2.bf16.xpose.msra.mxu0 0
        %1074 = vmatprep.subr.bf16.mxu0 0
        %1075 = vmatpush2.bf16.xpose.msra.mxu0 0
        %1076 = vmatprep.subr.bf16.mxu0 0
        %1077 = vmatpush2.bf16.xpose.msra.mxu0 0
        %1078 = vmatprep.subr.bf16.mxu0 0
        %1079 = vmatpush2.bf16.xpose.msra.mxu0 0
        %1080 = vmatprep.subr.bf16.mxu0 0
        %1081 = vmatpush2.bf16.xpose.msra.mxu0 0
        %1082 = vmatprep.mubr.bf16.mxu0 0
        %1083 = vmatmul.mubr.bf16.gmra.mxu0 %v1045
        %v1084 = vpop.f32.mrf.mxu0
        %v1085 = vadd.f32 %v1023, %v1084
        %v1086 = vpop.f32.mrf.mxu0
        %v1087 = vpop.f32.mrf.mxu0
        %v1088 = vpop.f32.mrf.mxu0
        %1089 = vdwg.mxu0
        %1091 = vrot.lane.b32.xlu0 %v991, 96
        %v1092 = vpop.permute.xlu0 %1091
        %v1094 = vsel %vm1043, %v979, 0
        %v1097 = vsel %vm1043, %v1092, 0
        %1099 = vmatprep.subr.bf16.mxu0 0
        %1100 = vmatpush1.bf16.xpose.msra.mxu0 0
        %1101 = vmatprep.subr.bf16.mxu0 0
        %1102 = vmatpush1.bf16.xpose.msra.mxu0 0
        %1103 = vmatprep.subr.bf16.mxu0 0
        %1104 = vmatpush1.bf16.xpose.msra.mxu0 0
        %1105 = vmatprep.subr.bf16.mxu0 0
        %1106 = vmatpush1.bf16.xpose.msra.mxu0 0
        %1107 = vmatprep.subr.bf16.mxu0 0
        %1108 = vmatpush1.bf16.xpose.msra.mxu0 0
        %1109 = vmatprep.subr.bf16.mxu0 0
        %1110 = vmatpush1.bf16.xpose.msra.mxu0 0
        %1111 = vmatprep.subr.bf16.mxu0 0
        %1112 = vmatpush1.bf16.xpose.msra.mxu0 0
        %1113 = vmatprep.subr.bf16.mxu0 0
        %1114 = vmatpush1.bf16.xpose.msra.mxu0 %v1097
        %1115 = vmatprep.subr.bf16.mxu0 0
        %1116 = vmatpush2.bf16.xpose.msra.mxu0 0
        %1117 = vmatprep.subr.bf16.mxu0 0
        %1118 = vmatpush2.bf16.xpose.msra.mxu0 0
        %1119 = vmatprep.subr.bf16.mxu0 0
        %1120 = vmatpush2.bf16.xpose.msra.mxu0 0
        %1121 = vmatprep.subr.bf16.mxu0 0
        %1122 = vmatpush2.bf16.xpose.msra.mxu0 0
        %1123 = vmatprep.subr.bf16.mxu0 0
        %1124 = vmatpush2.bf16.xpose.msra.mxu0 0
        %1125 = vmatprep.subr.bf16.mxu0 0
        %1126 = vmatpush2.bf16.xpose.msra.mxu0 0
        %1127 = vmatprep.subr.bf16.mxu0 0
        %1128 = vmatpush2.bf16.xpose.msra.mxu0 0
        %1129 = vmatprep.subr.bf16.mxu0 0
        %1130 = vmatpush2.bf16.xpose.msra.mxu0 0
        %1131 = vmatprep.mubr.bf16.mxu0 0
        %1132 = vmatmul.mubr.bf16.gmra.mxu0 %v1094
        %v1133 = vpop.f32.mrf.mxu0
        %v1134 = vadd.f32 %v1027, %v1133
        %v1135 = vpop.f32.mrf.mxu0
        %v1136 = vpop.f32.mrf.mxu0
        %v1137 = vpop.f32.mrf.mxu0
        %1138 = vdwg.mxu0
        %1140 = vrot.lane.b32.xlu0 %v992, 96
        %v1141 = vpop.permute.xlu0 %1140
        %v1143 = vsel %vm1043, %v980, 0
        %v1146 = vsel %vm1043, %v1141, 0
        %1148 = vmatprep.subr.bf16.mxu0 0
        %1149 = vmatpush1.bf16.xpose.msra.mxu0 0
        %1150 = vmatprep.subr.bf16.mxu0 0
        %1151 = vmatpush1.bf16.xpose.msra.mxu0 0
        %1152 = vmatprep.subr.bf16.mxu0 0
        %1153 = vmatpush1.bf16.xpose.msra.mxu0 0
        %1154 = vmatprep.subr.bf16.mxu0 0
        %1155 = vmatpush1.bf16.xpose.msra.mxu0 0
        %1156 = vmatprep.subr.bf16.mxu0 0
        %1157 = vmatpush1.bf16.xpose.msra.mxu0 0
        %1158 = vmatprep.subr.bf16.mxu0 0
        %1159 = vmatpush1.bf16.xpose.msra.mxu0 0
        %1160 = vmatprep.subr.bf16.mxu0 0
        %1161 = vmatpush1.bf16.xpose.msra.mxu0 0
        %1162 = vmatprep.subr.bf16.mxu0 0
        %1163 = vmatpush1.bf16.xpose.msra.mxu0 %v1146
        %1164 = vmatprep.subr.bf16.mxu0 0
        %1165 = vmatpush2.bf16.xpose.msra.mxu0 0
        %1166 = vmatprep.subr.bf16.mxu0 0
        %1167 = vmatpush2.bf16.xpose.msra.mxu0 0
        %1168 = vmatprep.subr.bf16.mxu0 0
        %1169 = vmatpush2.bf16.xpose.msra.mxu0 0
        %1170 = vmatprep.subr.bf16.mxu0 0
        %1171 = vmatpush2.bf16.xpose.msra.mxu0 0
        %1172 = vmatprep.subr.bf16.mxu0 0
        %1173 = vmatpush2.bf16.xpose.msra.mxu0 0
        %1174 = vmatprep.subr.bf16.mxu0 0
        %1175 = vmatpush2.bf16.xpose.msra.mxu0 0
        %1176 = vmatprep.subr.bf16.mxu0 0
        %1177 = vmatpush2.bf16.xpose.msra.mxu0 0
        %1178 = vmatprep.subr.bf16.mxu0 0
        %1179 = vmatpush2.bf16.xpose.msra.mxu0 0
        %1180 = vmatprep.mubr.bf16.mxu0 0
        %1181 = vmatmul.mubr.bf16.gmra.mxu0 %v1143
        %v1182 = vpop.f32.mrf.mxu0
        %v1183 = vadd.f32 %v1031, %v1182
        %v1184 = vpop.f32.mrf.mxu0
        %v1185 = vpop.f32.mrf.mxu0
        %v1186 = vpop.f32.mrf.mxu0
        %1187 = vdwg.mxu0
        %1189 = vrot.lane.b32.xlu0 %v993, 96
        %v1190 = vpop.permute.xlu0 %1189
        %v1192 = vsel %vm1043, %v981, 0
        %v1195 = vsel %vm1043, %v1190, 0
        %1197 = vmatprep.subr.bf16.mxu0 0
        %1198 = vmatpush1.bf16.xpose.msra.mxu0 0
        %1199 = vmatprep.subr.bf16.mxu0 0
        %1200 = vmatpush1.bf16.xpose.msra.mxu0 0
        %1201 = vmatprep.subr.bf16.mxu0 0
        %1202 = vmatpush1.bf16.xpose.msra.mxu0 0
        %1203 = vmatprep.subr.bf16.mxu0 0
        %1204 = vmatpush1.bf16.xpose.msra.mxu0 0
        %1205 = vmatprep.subr.bf16.mxu0 0
        %1206 = vmatpush1.bf16.xpose.msra.mxu0 0
        %1207 = vmatprep.subr.bf16.mxu0 0
        %1208 = vmatpush1.bf16.xpose.msra.mxu0 0
        %1209 = vmatprep.subr.bf16.mxu0 0
        %1210 = vmatpush1.bf16.xpose.msra.mxu0 0
        %1211 = vmatprep.subr.bf16.mxu0 0
        %1212 = vmatpush1.bf16.xpose.msra.mxu0 %v1195
        %1213 = vmatprep.subr.bf16.mxu0 0
        %1214 = vmatpush2.bf16.xpose.msra.mxu0 0
        %1215 = vmatprep.subr.bf16.mxu0 0
        %1216 = vmatpush2.bf16.xpose.msra.mxu0 0
        %1217 = vmatprep.subr.bf16.mxu0 0
        %1218 = vmatpush2.bf16.xpose.msra.mxu0 0
        %1219 = vmatprep.subr.bf16.mxu0 0
        %1220 = vmatpush2.bf16.xpose.msra.mxu0 0
        %1221 = vmatprep.subr.bf16.mxu0 0
        %1222 = vmatpush2.bf16.xpose.msra.mxu0 0
        %1223 = vmatprep.subr.bf16.mxu0 0
        %1224 = vmatpush2.bf16.xpose.msra.mxu0 0
        %1225 = vmatprep.subr.bf16.mxu0 0
        %1226 = vmatpush2.bf16.xpose.msra.mxu0 0
        %1227 = vmatprep.subr.bf16.mxu0 0
        %1228 = vmatpush2.bf16.xpose.msra.mxu0 0
        %1229 = vmatprep.mubr.bf16.mxu0 0
        %1230 = vmatmul.mubr.bf16.gmra.mxu0 %v1192
        %v1231 = vpop.f32.mrf.mxu0
        %v1232 = vadd.f32 %v1035, %v1231
        %v1233 = vpop.f32.mrf.mxu0
        %v1234 = vpop.f32.mrf.mxu0
        %v1235 = vpop.f32.mrf.mxu0
        %1236 = vdwg.mxu0
        %vm1237 = vcmask 64512
        %v1238 = vsel %vm1237, %v1085, -inf
        %1239 = vmax.xlane.f32.xlu0 %v1238
        %v1240 = vpop.xlane.xlu0 %1239
        %v1241 = vsel %vm1237, %v1134, -inf
        %1242 = vmax.xlane.f32.xlu0 %v1241
        %v1243 = vpop.xlane.xlu0 %1242
        %v1244 = vsel %vm1237, %v1183, -inf
        %1245 = vmax.xlane.f32.xlu0 %v1244
        %v1246 = vpop.xlane.xlu0 %1245
        %v1247 = vsel %vm1237, %v1232, -inf
        %1248 = vmax.xlane.f32.xlu0 %v1247
        %v1249 = vpop.xlane.xlu0 %1248
        %v1250 = vsub.f32 %v1085, %v1240
        %v1251 = vsub.f32 %v1134, %v1243
        %v1252 = vsub.f32 %v1183, %v1246
        %v1253 = vsub.f32 %v1232, %v1249
        %v1254 = vmul.f32 %v1250, 1.442695
        %v1255 = vpow.pop %v1254
        %v1256 = vmul.f32 %v1251, 1.442695
        %v1257 = vpow.pop %v1256
        %v1258 = vmul.f32 %v1252, 1.442695
        %v1259 = vpow.pop %v1258
        %v1260 = vmul.f32 %v1253, 1.442695
        %v1261 = vpow.pop %v1260
        %v1262 = vsel %vm1237, %v1255, 0.0
        %1263 = vadd.xlane.f32.xlu0 %v1262
        %v1264 = vpop.xlane.xlu0 %1263
        %v1265 = vsel %vm1237, %v1257, 0.0
        %1266 = vadd.xlane.f32.xlu0 %v1265
        %v1267 = vpop.xlane.xlu0 %1266
        %v1268 = vsel %vm1237, %v1259, 0.0
        %1269 = vadd.xlane.f32.xlu0 %v1268
        %v1270 = vpop.xlane.xlu0 %1269
        %v1271 = vsel %vm1237, %v1261, 0.0
        %1272 = vadd.xlane.f32.xlu0 %v1271
        %v1273 = vpop.xlane.xlu0 %1272
        %v1274 = vrcp.pop %v1264
        %v1275 = vrcp.pop %v1267
        %v1276 = vrcp.pop %v1270
        %v1277 = vrcp.pop %v1273
        %v1278 = vmul.f32 %v1255, %v1274
        %v1279 = vmul.f32 %v1257, %v1275
        %v1280 = vmul.f32 %v1259, %v1276
        %v1281 = vmul.f32 %v1261, %v1277
        %v1282 = vpack.c.bf16 %v1278, %v1278
        %v1283 = vpack.c.bf16 %v1279, %v1279
        %v1284 = vpack.c.bf16 %v1280, %v1280
        %v1285 = vpack.c.bf16 %v1281, %v1281
        %1286 = vrot.lane.b32.xlu0 %v990, 64
        %v1287 = vpop.permute.xlu0 %1286
        %v1289 = vsel %vm1237, %v1282, 0
        %vm1291 = vcmask 1043456
        %v1293 = vsel %vm1291, %v1287, 0
        %1295 = vmatprep.subr.bf16.mxu0 0
        %1296 = vmatpush1.bf16.msra.mxu0 0
        %1297 = vmatprep.subr.bf16.mxu0 0
        %1298 = vmatpush1.bf16.msra.mxu0 0
        %1299 = vmatprep.subr.bf16.mxu0 0
        %1300 = vmatpush1.bf16.msra.mxu0 0
        %1301 = vmatprep.subr.bf16.mxu0 0
        %1302 = vmatpush1.bf16.msra.mxu0 0
        %1303 = vmatprep.subr.bf16.mxu0 0
        %1304 = vmatpush1.bf16.msra.mxu0 0
        %1305 = vmatprep.subr.bf16.mxu0 0
        %1306 = vmatpush1.bf16.msra.mxu0 0
        %1307 = vmatprep.subr.bf16.mxu0 0
        %1308 = vmatpush1.bf16.msra.mxu0 0
        %1309 = vmatprep.subr.bf16.mxu0 0
        %1310 = vmatpush1.bf16.msra.mxu0 %v1293
        %1311 = vmatprep.subr.bf16.mxu0 0
        %1312 = vmatpush2.bf16.msra.mxu0 0
        %1313 = vmatprep.subr.bf16.mxu0 0
        %1314 = vmatpush2.bf16.msra.mxu0 0
        %1315 = vmatprep.subr.bf16.mxu0 0
        %1316 = vmatpush2.bf16.msra.mxu0 0
        %1317 = vmatprep.subr.bf16.mxu0 0
        %1318 = vmatpush2.bf16.msra.mxu0 0
        %1319 = vmatprep.subr.bf16.mxu0 0
        %1320 = vmatpush2.bf16.msra.mxu0 0
        %1321 = vmatprep.subr.bf16.mxu0 0
        %1322 = vmatpush2.bf16.msra.mxu0 0
        %1323 = vmatprep.subr.bf16.mxu0 0
        %1324 = vmatpush2.bf16.msra.mxu0 0
        %1325 = vmatprep.subr.bf16.mxu0 0
        %1326 = vmatpush2.bf16.msra.mxu0 0
        %1327 = vmatprep.mubr.bf16.mxu0 0
        %1328 = vmatmul.mubr.bf16.gmra.mxu0 %v1289
        %v1329 = vpop.f32.mrf.mxu0
        %v1330 = vadd.f32 0.0, %v1329
        %v1331 = vpop.f32.mrf.mxu0
        %v1332 = vpop.f32.mrf.mxu0
        %v1333 = vpop.f32.mrf.mxu0
        %1334 = vdwg.mxu0
        %1335 = vrot.lane.b32.xlu0 %v991, 64
        %v1336 = vpop.permute.xlu0 %1335
        %v1338 = vsel %vm1237, %v1283, 0
        %v1341 = vsel %vm1291, %v1336, 0
        %1343 = vmatprep.subr.bf16.mxu0 0
        %1344 = vmatpush1.bf16.msra.mxu0 0
        %1345 = vmatprep.subr.bf16.mxu0 0
        %1346 = vmatpush1.bf16.msra.mxu0 0
        %1347 = vmatprep.subr.bf16.mxu0 0
        %1348 = vmatpush1.bf16.msra.mxu0 0
        %1349 = vmatprep.subr.bf16.mxu0 0
        %1350 = vmatpush1.bf16.msra.mxu0 0
        %1351 = vmatprep.subr.bf16.mxu0 0
        %1352 = vmatpush1.bf16.msra.mxu0 0
        %1353 = vmatprep.subr.bf16.mxu0 0
        %1354 = vmatpush1.bf16.msra.mxu0 0
        %1355 = vmatprep.subr.bf16.mxu0 0
        %1356 = vmatpush1.bf16.msra.mxu0 0
        %1357 = vmatprep.subr.bf16.mxu0 0
        %1358 = vmatpush1.bf16.msra.mxu0 %v1341
        %1359 = vmatprep.subr.bf16.mxu0 0
        %1360 = vmatpush2.bf16.msra.mxu0 0
        %1361 = vmatprep.subr.bf16.mxu0 0
        %1362 = vmatpush2.bf16.msra.mxu0 0
        %1363 = vmatprep.subr.bf16.mxu0 0
        %1364 = vmatpush2.bf16.msra.mxu0 0
        %1365 = vmatprep.subr.bf16.mxu0 0
        %1366 = vmatpush2.bf16.msra.mxu0 0
        %1367 = vmatprep.subr.bf16.mxu0 0
        %1368 = vmatpush2.bf16.msra.mxu0 0
        %1369 = vmatprep.subr.bf16.mxu0 0
        %1370 = vmatpush2.bf16.msra.mxu0 0
        %1371 = vmatprep.subr.bf16.mxu0 0
        %1372 = vmatpush2.bf16.msra.mxu0 0
        %1373 = vmatprep.subr.bf16.mxu0 0
        %1374 = vmatpush2.bf16.msra.mxu0 0
        %1375 = vmatprep.mubr.bf16.mxu0 0
        %1376 = vmatmul.mubr.bf16.gmra.mxu0 %v1338
        %v1377 = vpop.f32.mrf.mxu0
        %v1378 = vadd.f32 0.0, %v1377
        %v1379 = vpop.f32.mrf.mxu0
        %v1380 = vpop.f32.mrf.mxu0
        %v1381 = vpop.f32.mrf.mxu0
        %1382 = vdwg.mxu0
        %1383 = vrot.lane.b32.xlu0 %v992, 64
        %v1384 = vpop.permute.xlu0 %1383
        %v1386 = vsel %vm1237, %v1284, 0
        %v1389 = vsel %vm1291, %v1384, 0
        %1391 = vmatprep.subr.bf16.mxu0 0
        %1392 = vmatpush1.bf16.msra.mxu0 0
        %1393 = vmatprep.subr.bf16.mxu0 0
        %1394 = vmatpush1.bf16.msra.mxu0 0
        %1395 = vmatprep.subr.bf16.mxu0 0
        %1396 = vmatpush1.bf16.msra.mxu0 0
        %1397 = vmatprep.subr.bf16.mxu0 0
        %1398 = vmatpush1.bf16.msra.mxu0 0
        %1399 = vmatprep.subr.bf16.mxu0 0
        %1400 = vmatpush1.bf16.msra.mxu0 0
        %1401 = vmatprep.subr.bf16.mxu0 0
        %1402 = vmatpush1.bf16.msra.mxu0 0
        %1403 = vmatprep.subr.bf16.mxu0 0
        %1404 = vmatpush1.bf16.msra.mxu0 0
        %1405 = vmatprep.subr.bf16.mxu0 0
        %1406 = vmatpush1.bf16.msra.mxu0 %v1389
        %1407 = vmatprep.subr.bf16.mxu0 0
        %1408 = vmatpush2.bf16.msra.mxu0 0
        %1409 = vmatprep.subr.bf16.mxu0 0
        %1410 = vmatpush2.bf16.msra.mxu0 0
        %1411 = vmatprep.subr.bf16.mxu0 0
        %1412 = vmatpush2.bf16.msra.mxu0 0
        %1413 = vmatprep.subr.bf16.mxu0 0
        %1414 = vmatpush2.bf16.msra.mxu0 0
        %1415 = vmatprep.subr.bf16.mxu0 0
        %1416 = vmatpush2.bf16.msra.mxu0 0
        %1417 = vmatprep.subr.bf16.mxu0 0
        %1418 = vmatpush2.bf16.msra.mxu0 0
        %1419 = vmatprep.subr.bf16.mxu0 0
        %1420 = vmatpush2.bf16.msra.mxu0 0
        %1421 = vmatprep.subr.bf16.mxu0 0
        %1422 = vmatpush2.bf16.msra.mxu0 0
        %1423 = vmatprep.mubr.bf16.mxu0 0
        %1424 = vmatmul.mubr.bf16.gmra.mxu0 %v1386
        %v1425 = vpop.f32.mrf.mxu0
        %v1426 = vadd.f32 0.0, %v1425
        %v1427 = vpop.f32.mrf.mxu0
        %v1428 = vpop.f32.mrf.mxu0
        %v1429 = vpop.f32.mrf.mxu0
        %1430 = vdwg.mxu0
        %1431 = vrot.lane.b32.xlu0 %v993, 64
        %v1432 = vpop.permute.xlu0 %1431
        %v1434 = vsel %vm1237, %v1285, 0
        %v1437 = vsel %vm1291, %v1432, 0
        %1439 = vmatprep.subr.bf16.mxu0 0
        %1440 = vmatpush1.bf16.msra.mxu0 0
        %1441 = vmatprep.subr.bf16.mxu0 0
        %1442 = vmatpush1.bf16.msra.mxu0 0
        %1443 = vmatprep.subr.bf16.mxu0 0
        %1444 = vmatpush1.bf16.msra.mxu0 0
        %1445 = vmatprep.subr.bf16.mxu0 0
        %1446 = vmatpush1.bf16.msra.mxu0 0
        %1447 = vmatprep.subr.bf16.mxu0 0
        %1448 = vmatpush1.bf16.msra.mxu0 0
        %1449 = vmatprep.subr.bf16.mxu0 0
        %1450 = vmatpush1.bf16.msra.mxu0 0
        %1451 = vmatprep.subr.bf16.mxu0 0
        %1452 = vmatpush1.bf16.msra.mxu0 0
        %1453 = vmatprep.subr.bf16.mxu0 0
        %1454 = vmatpush1.bf16.msra.mxu0 %v1437
        %1455 = vmatprep.subr.bf16.mxu0 0
        %1456 = vmatpush2.bf16.msra.mxu0 0
        %1457 = vmatprep.subr.bf16.mxu0 0
        %1458 = vmatpush2.bf16.msra.mxu0 0
        %1459 = vmatprep.subr.bf16.mxu0 0
        %1460 = vmatpush2.bf16.msra.mxu0 0
        %1461 = vmatprep.subr.bf16.mxu0 0
        %1462 = vmatpush2.bf16.msra.mxu0 0
        %1463 = vmatprep.subr.bf16.mxu0 0
        %1464 = vmatpush2.bf16.msra.mxu0 0
        %1465 = vmatprep.subr.bf16.mxu0 0
        %1466 = vmatpush2.bf16.msra.mxu0 0
        %1467 = vmatprep.subr.bf16.mxu0 0
        %1468 = vmatpush2.bf16.msra.mxu0 0
        %1469 = vmatprep.subr.bf16.mxu0 0
        %1470 = vmatpush2.bf16.msra.mxu0 0
        %1471 = vmatprep.mubr.bf16.mxu0 0
        %1472 = vmatmul.mubr.bf16.gmra.mxu0 %v1434
        %v1473 = vpop.f32.mrf.mxu0
        %v1474 = vadd.f32 0.0, %v1473
        %v1475 = vpop.f32.mrf.mxu0
        %v1476 = vpop.f32.mrf.mxu0
        %v1477 = vpop.f32.mrf.mxu0
        %1478 = vdwg.mxu0
        %1481 = vrot.lane.b32.xlu0 %v1426, 16
        %v1482 = vpop.permute.xlu0 %1481
        %1483 = vrot.lane.b32.xlu0 %v1474, 16
        %v1484 = vpop.permute.xlu0 %1483
        %v1487 = vsel %vm1043, %v1330, %v1482
        %v1488 = vsel %vm1043, %v1378, %v1484
        %v1489 = vpack.c.bf16 %v1488, %v1487
        %v1490 = vld [vmem:[%s810] sm:$0xf]
        %v1491 = vld [vmem:[%s810 + $0x4] sm:$0xf]
        %v1492 = vld [vmem:[%s810 + $0x8] sm:$0xf]
        %v1493 = vld [vmem:[%s810 + $0xc] sm:$0xf]
        %v1494 = vld [vmem:[%s813] sm:$0x1]
        %v1496 = vlaneseq
        %v1497 = vshrl.u32 %v1496, 7
        %v1498 = vsub.s32 0, %v1497
        %v1499 = vrot.slane %v1494, %v1498
        %v1505 = vunpack.c.l.b16 %v1490
        %v1506 = vunpack.c.l.b16 %v1491
        %v1507 = vunpack.c.l.b16 %v1492
        %v1508 = vunpack.c.l.b16 %v1493
        %v1509 = vpack.c.b16 %v1506, %v1505
        %v1510 = vpack.c.b16 %v1508, %v1507
        %v1514 = vsel %vm923, %v1489, 0
        %1516 = vmatprep.subr.bf16.mxu0 0
        %1517 = vmatpush1.bf16.msra.mxu0 0
        %1518 = vmatprep.subr.bf16.mxu0 0
        %1519 = vmatpush1.bf16.msra.mxu0 0
        %1520 = vmatprep.subr.bf16.mxu0 0
        %1521 = vmatpush1.bf16.msra.mxu0 0
        %1522 = vmatprep.subr.bf16.mxu0 0
        %1523 = vmatpush1.bf16.msra.mxu0 0
        %1524 = vmatprep.subr.bf16.mxu0 0
        %1525 = vmatpush1.bf16.msra.mxu0 0
        %1526 = vmatprep.subr.bf16.mxu0 0
        %1527 = vmatpush1.bf16.msra.mxu0 0
        %1528 = vmatprep.subr.bf16.mxu0 0
        %1529 = vmatpush1.bf16.msra.mxu0 %v1510
        %1530 = vmatprep.subr.bf16.mxu0 0
        %1531 = vmatpush1.bf16.msra.mxu0 %v1509
        %1532 = vmatprep.subr.bf16.mxu0 0
        %1533 = vmatpush2.bf16.msra.mxu0 0
        %1534 = vmatprep.subr.bf16.mxu0 0
        %1535 = vmatpush2.bf16.msra.mxu0 0
        %1536 = vmatprep.subr.bf16.mxu0 0
        %1537 = vmatpush2.bf16.msra.mxu0 0
        %1538 = vmatprep.subr.bf16.mxu0 0
        %1539 = vmatpush2.bf16.msra.mxu0 0
        %1540 = vmatprep.subr.bf16.mxu0 0
        %1541 = vmatpush2.bf16.msra.mxu0 0
        %1542 = vmatprep.subr.bf16.mxu0 0
        %1543 = vmatpush2.bf16.msra.mxu0 0
        %1544 = vmatprep.subr.bf16.mxu0 0
        %1545 = vmatpush2.bf16.msra.mxu0 0
        %1546 = vmatprep.subr.bf16.mxu0 0
        %1547 = vmatpush2.bf16.msra.mxu0 0
        %1548 = vmatprep.mubr.bf16.mxu0 0
        %1549 = vmatmul.mubr.bf16.gmra.mxu0 %v1514
        %v1550 = vpop.f32.mrf.mxu0
        %v1551 = vadd.f32 %v1499, %v1550
        %v1552 = vpop.f32.mrf.mxu0
        %v1553 = vpop.f32.mrf.mxu0
        %v1554 = vadd.f32 %v1499, %v1553
        %v1555 = vpop.f32.mrf.mxu0
        %1556 = vdwg.mxu0
        %v1557 = vadd.f32 %v1551, %v897
        %v1558 = vadd.f32 %v1554, %v898
        %v1559 = vld [vmem:[%s816] sm:$0x1]
        %v1560 = vld [vmem:[%s819] sm:$0x1]
        %v1561 = vsel %vm923, %v1557, 0.0
        %1562 = vadd.xlane.f32.xlu0 %v1561
        %v1563 = vpop.xlane.xlu0 %1562
        %v1564 = vsel %vm923, %v1558, 0.0
        %1565 = vadd.xlane.f32.xlu0 %v1564
        %v1566 = vpop.xlane.xlu0 %1565
        %v1567 = vrcp.pop 32.0
        %v1568 = vmul.f32 %v1563, %v1567
        %v1569 = vmul.f32 %v1566, %v1567
        %v1570 = vsub.f32 %v1557, %v1568
        %v1571 = vsub.f32 %v1558, %v1569
        %v1572 = vmul.f32 %v1570, %v1570
        %v1573 = vmul.f32 %v1571, %v1571
        %v1574 = vsel %vm923, %v1572, 0.0
        %1575 = vadd.xlane.f32.xlu0 %v1574
        %v1576 = vpop.xlane.xlu0 %1575
        %v1577 = vsel %vm923, %v1573, 0.0
        %1578 = vadd.xlane.f32.xlu0 %v1577
        %v1579 = vpop.xlane.xlu0 %1578
        %v1580 = vmul.f32 %v1576, %v1567
        %v1581 = vmul.f32 %v1579, %v1567
        %v1582 = vadd.f32 %v1580, 1e-12
        %v1583 = vadd.f32 %v1581, 1e-12
        %v1584 = vrsqrt.pop %v1582
        %v1585 = vrsqrt.pop %v1583
        %v1586 = vmul.f32 %v1570, %v1584
        %v1587 = vmul.f32 %v1571, %v1585
        %v1589 = vlaneseq
        %v1590 = vshrl.u32 %v1589, 7
        %v1591 = vsub.s32 0, %v1590
        %v1592 = vrot.slane %v1559, %v1591
        %v1594 = vmul.f32 %v1586, %v1592
        %v1595 = vmul.f32 %v1587, %v1592
        %v1597 = vlaneseq
        %v1598 = vshrl.u32 %v1597, 7
        %v1599 = vsub.s32 0, %v1598
        %v1600 = vrot.slane %v1560, %v1599
        %v1602 = vadd.f32 %v1594, %v1600
        %v1603 = vadd.f32 %v1595, %v1600
        %v1604 = vpack.c.bf16 %v1603, %v1602
        %v1605 = vld [vmem:[%s824] sm:$0xf]
        %v1606 = vld [vmem:[%s824 + $0x4] sm:$0xf]
        %v1607 = vld [vmem:[%s824 + $0x8] sm:$0xf]
        %v1608 = vld [vmem:[%s824 + $0xc] sm:$0xf]
        %v1609 = vld [vmem:[%s827] sm:$0x1]
        %v1611 = vlaneseq
        %v1612 = vshrl.u32 %v1611, 7
        %v1613 = vsub.s32 0, %v1612
        %v1614 = vrot.slane %v1609, %v1613
        %v1620 = vunpack.c.l.b16 %v1605
        %v1621 = vunpack.c.l.b16 %v1606
        %v1622 = vunpack.c.l.b16 %v1607
        %v1623 = vunpack.c.l.b16 %v1608
        %v1624 = vpack.c.b16 %v1621, %v1620
        %v1625 = vpack.c.b16 %v1623, %v1622
        %v1629 = vsel %vm923, %v1604, 0
        %1631 = vmatprep.subr.bf16.mxu0 0
        %1632 = vmatpush1.bf16.msra.mxu0 0
        %1633 = vmatprep.subr.bf16.mxu0 0
        %1634 = vmatpush1.bf16.msra.mxu0 0
        %1635 = vmatprep.subr.bf16.mxu0 0
        %1636 = vmatpush1.bf16.msra.mxu0 0
        %1637 = vmatprep.subr.bf16.mxu0 0
        %1638 = vmatpush1.bf16.msra.mxu0 0
        %1639 = vmatprep.subr.bf16.mxu0 0
        %1640 = vmatpush1.bf16.msra.mxu0 0
        %1641 = vmatprep.subr.bf16.mxu0 0
        %1642 = vmatpush1.bf16.msra.mxu0 0
        %1643 = vmatprep.subr.bf16.mxu0 0
        %1644 = vmatpush1.bf16.msra.mxu0 %v1625
        %1645 = vmatprep.subr.bf16.mxu0 0
        %1646 = vmatpush1.bf16.msra.mxu0 %v1624
        %1647 = vmatprep.subr.bf16.mxu0 0
        %1648 = vmatpush2.bf16.msra.mxu0 0
        %1649 = vmatprep.subr.bf16.mxu0 0
        %1650 = vmatpush2.bf16.msra.mxu0 0
        %1651 = vmatprep.subr.bf16.mxu0 0
        %1652 = vmatpush2.bf16.msra.mxu0 0
        %1653 = vmatprep.subr.bf16.mxu0 0
        %1654 = vmatpush2.bf16.msra.mxu0 0
        %1655 = vmatprep.subr.bf16.mxu0 0
        %1656 = vmatpush2.bf16.msra.mxu0 0
        %1657 = vmatprep.subr.bf16.mxu0 0
        %1658 = vmatpush2.bf16.msra.mxu0 0
        %1659 = vmatprep.subr.bf16.mxu0 0
        %1660 = vmatpush2.bf16.msra.mxu0 0
        %1661 = vmatprep.subr.bf16.mxu0 0
        %1662 = vmatpush2.bf16.msra.mxu0 0
        %1663 = vmatprep.mubr.bf16.mxu0 0
        %1664 = vmatmul.mubr.bf16.gmra.mxu0 %v1629
        %v1665 = vpop.f32.mrf.mxu0
        %v1666 = vadd.f32 %v1614, %v1665
        %v1667 = vpop.f32.mrf.mxu0
        %v1668 = vpop.f32.mrf.mxu0
        %v1669 = vadd.f32 %v1614, %v1668
        %v1670 = vpop.f32.mrf.mxu0
        %1671 = vdwg.mxu0
        %v1672 = vmul.f32 %v1666, 0.5
        %v1673 = vmul.f32 %v1669, 0.5
        %v1674 = vrcp.pop 1.4142135
        %v1675 = vmul.f32 %v1666, %v1674
        %v1676 = vmul.f32 %v1669, %v1674
        %v1677 = verf.f32.pop %v1675
        %v1678 = verf.f32.pop %v1676
        %v1679 = vadd.f32 %v1677, 1.0
        %v1680 = vadd.f32 %v1678, 1.0
        %v1681 = vmul.f32 %v1672, %v1679
        %v1682 = vmul.f32 %v1673, %v1680
        %v1683 = vpack.c.bf16 %v1682, %v1681
        %v1684 = vld [vmem:[%s832] sm:$0xf]
        %v1685 = vld [vmem:[%s832 + $0x4] sm:$0xf]
        %v1686 = vld [vmem:[%s832 + $0x8] sm:$0xf]
        %v1687 = vld [vmem:[%s832 + $0xc] sm:$0xf]
        %v1688 = vld [vmem:[%s832 + $0x10] sm:$0xf]
        %v1689 = vld [vmem:[%s832 + $0x14] sm:$0xf]
        %v1690 = vld [vmem:[%s832 + $0x18] sm:$0xf]
        %v1691 = vld [vmem:[%s832 + $0x1c] sm:$0xf]
        %v1692 = vld [vmem:[%s835] sm:$0x1]
        %v1694 = vlaneseq
        %v1695 = vshrl.u32 %v1694, 7
        %v1696 = vsub.s32 0, %v1695
        %v1697 = vrot.slane %v1692, %v1696
        %v1707 = vunpack.c.l.b16 %v1684
        %v1708 = vunpack.c.l.b16 %v1685
        %v1709 = vunpack.c.l.b16 %v1686
        %v1710 = vunpack.c.l.b16 %v1687
        %v1711 = vunpack.c.l.b16 %v1688
        %v1712 = vunpack.c.l.b16 %v1689
        %v1713 = vunpack.c.l.b16 %v1690
        %v1714 = vunpack.c.l.b16 %v1691
        %v1715 = vpack.c.b16 %v1708, %v1707
        %v1716 = vpack.c.b16 %v1710, %v1709
        %v1717 = vpack.c.b16 %v1712, %v1711
        %v1718 = vpack.c.b16 %v1714, %v1713
        %vm1723 = vcmask 523264
        %v1725 = vsel %vm1723, %v1683, 0
        %1727 = vmatprep.subr.bf16.mxu0 0
        %1728 = vmatpush1.bf16.msra.mxu0 0
        %1729 = vmatprep.subr.bf16.mxu0 0
        %1730 = vmatpush1.bf16.msra.mxu0 0
        %1731 = vmatprep.subr.bf16.mxu0 0
        %1732 = vmatpush1.bf16.msra.mxu0 0
        %1733 = vmatprep.subr.bf16.mxu0 0
        %1734 = vmatpush1.bf16.msra.mxu0 0
        %1735 = vmatprep.subr.bf16.mxu0 0
        %1736 = vmatpush1.bf16.msra.mxu0 %v1718
        %1737 = vmatprep.subr.bf16.mxu0 0
        %1738 = vmatpush1.bf16.msra.mxu0 %v1717
        %1739 = vmatprep.subr.bf16.mxu0 0
        %1740 = vmatpush1.bf16.msra.mxu0 %v1716
        %1741 = vmatprep.subr.bf16.mxu0 0
        %1742 = vmatpush1.bf16.msra.mxu0 %v1715
        %1743 = vmatprep.subr.bf16.mxu0 0
        %1744 = vmatpush2.bf16.msra.mxu0 0
        %1745 = vmatprep.subr.bf16.mxu0 0
        %1746 = vmatpush2.bf16.msra.mxu0 0
        %1747 = vmatprep.subr.bf16.mxu0 0
        %1748 = vmatpush2.bf16.msra.mxu0 0
        %1749 = vmatprep.subr.bf16.mxu0 0
        %1750 = vmatpush2.bf16.msra.mxu0 0
        %1751 = vmatprep.subr.bf16.mxu0 0
        %1752 = vmatpush2.bf16.msra.mxu0 0
        %1753 = vmatprep.subr.bf16.mxu0 0
        %1754 = vmatpush2.bf16.msra.mxu0 0
        %1755 = vmatprep.subr.bf16.mxu0 0
        %1756 = vmatpush2.bf16.msra.mxu0 0
        %1757 = vmatprep.subr.bf16.mxu0 0
        %1758 = vmatpush2.bf16.msra.mxu0 0
        %1759 = vmatprep.mubr.bf16.mxu0 0
        %1760 = vmatmul.mubr.bf16.gmra.mxu0 %v1725
        %v1761 = vpop.f32.mrf.mxu0
        %v1762 = vadd.f32 %v1697, %v1761
        %v1763 = vpop.f32.mrf.mxu0
        %v1764 = vpop.f32.mrf.mxu0
        %v1765 = vadd.f32 %v1697, %v1764
        %v1766 = vpop.f32.mrf.mxu0
        %1767 = vdwg.mxu0
        %v1768 = vadd.f32 %v1762, %v1602
        %v1769 = vadd.f32 %v1765, %v1603
        %v1770 = vld [vmem:[%s838] sm:$0x1]
        %v1771 = vld [vmem:[%s841] sm:$0x1]
        %v1772 = vsel %vm923, %v1768, 0.0
        %1773 = vadd.xlane.f32.xlu0 %v1772
        %v1774 = vpop.xlane.xlu0 %1773
        %v1775 = vsel %vm923, %v1769, 0.0
        %1776 = vadd.xlane.f32.xlu0 %v1775
        %v1777 = vpop.xlane.xlu0 %1776
        %v1778 = vmul.f32 %v1774, %v1567
        %v1779 = vmul.f32 %v1777, %v1567
        %v1780 = vsub.f32 %v1768, %v1778
        %v1781 = vsub.f32 %v1769, %v1779
        %v1782 = vmul.f32 %v1780, %v1780
        %v1783 = vmul.f32 %v1781, %v1781
        %v1784 = vsel %vm923, %v1782, 0.0
        %1785 = vadd.xlane.f32.xlu0 %v1784
        %v1786 = vpop.xlane.xlu0 %1785
        %v1787 = vsel %vm923, %v1783, 0.0
        %1788 = vadd.xlane.f32.xlu0 %v1787
        %v1789 = vpop.xlane.xlu0 %1788
        %v1790 = vmul.f32 %v1786, %v1567
        %v1791 = vmul.f32 %v1789, %v1567
        %v1792 = vadd.f32 %v1790, 1e-12
        %v1793 = vadd.f32 %v1791, 1e-12
        %v1794 = vrsqrt.pop %v1792
        %v1795 = vrsqrt.pop %v1793
        %v1796 = vmul.f32 %v1780, %v1794
        %v1797 = vmul.f32 %v1781, %v1795
        %v1799 = vlaneseq
        %v1800 = vshrl.u32 %v1799, 7
        %v1801 = vsub.s32 0, %v1800
        %v1802 = vrot.slane %v1770, %v1801
        %v1804 = vmul.f32 %v1796, %v1802
        %v1805 = vmul.f32 %v1797, %v1802
        %v1807 = vlaneseq
        %v1808 = vshrl.u32 %v1807, 7
        %v1809 = vsub.s32 0, %v1808
        %v1810 = vrot.slane %v1771, %v1809
        %v1812 = vadd.f32 %v1804, %v1810
        %v1813 = vadd.f32 %v1805, %v1810
        %1814 = vst.msk [vmem:[#allocation2] sm:$0xff] %vm923, %v1812
        %1815 = vst.msk [vmem:[#allocation2 + $0x8] sm:$0xff] %vm923, %v1813
        %p1816 = scmp.eq.s32.totalorder %s34, 1
        // Predicated region
        $region113: #{tpu_custom_call.1} parent=107 // pred_check
          %p1817 = pneg %p1816
        $region114: #{tpu_custom_call.1} parent=107 // pred_check_branch
          %1819 = sbr.rel (%p1817) target = $region116
        $region115: #{tpu_custom_call.1} parent=107 // pred_region
          %v1820 = vpack.c.bf16 %v1813, %v1812
          %v1821 = vld [vmem:[%s16] sm:$0xf]
          %v1822 = vld [vmem:[%s16 + $0x4] sm:$0xf]
          %v1823 = vld [vmem:[%s16 + $0x8] sm:$0xf]
          %v1824 = vld [vmem:[%s16 + $0xc] sm:$0xf]
          %v1825 = vld [vmem:[%s17] sm:$0x1]
          %v1827 = vlaneseq
          %v1828 = vshrl.u32 %v1827, 7
          %v1829 = vsub.s32 0, %v1828
          %v1830 = vrot.slane %v1825, %v1829
          %v1836 = vunpack.c.l.b16 %v1821
          %v1837 = vunpack.c.l.b16 %v1822
          %v1838 = vunpack.c.l.b16 %v1823
          %v1839 = vunpack.c.l.b16 %v1824
          %v1840 = vpack.c.b16 %v1837, %v1836
          %v1841 = vpack.c.b16 %v1839, %v1838
          %v1845 = vsel %vm923, %v1820, 0
          %1847 = vmatprep.subr.bf16.mxu0 0
          %1848 = vmatpush1.bf16.msra.mxu0 0
          %1849 = vmatprep.subr.bf16.mxu0 0
          %1850 = vmatpush1.bf16.msra.mxu0 0
          %1851 = vmatprep.subr.bf16.mxu0 0
          %1852 = vmatpush1.bf16.msra.mxu0 0
          %1853 = vmatprep.subr.bf16.mxu0 0
          %1854 = vmatpush1.bf16.msra.mxu0 0
          %1855 = vmatprep.subr.bf16.mxu0 0
          %1856 = vmatpush1.bf16.msra.mxu0 0
          %1857 = vmatprep.subr.bf16.mxu0 0
          %1858 = vmatpush1.bf16.msra.mxu0 0
          %1859 = vmatprep.subr.bf16.mxu0 0
          %1860 = vmatpush1.bf16.msra.mxu0 %v1841
          %1861 = vmatprep.subr.bf16.mxu0 0
          %1862 = vmatpush1.bf16.msra.mxu0 %v1840
          %1863 = vmatprep.subr.bf16.mxu0 0
          %1864 = vmatpush2.bf16.msra.mxu0 0
          %1865 = vmatprep.subr.bf16.mxu0 0
          %1866 = vmatpush2.bf16.msra.mxu0 0
          %1867 = vmatprep.subr.bf16.mxu0 0
          %1868 = vmatpush2.bf16.msra.mxu0 0
          %1869 = vmatprep.subr.bf16.mxu0 0
          %1870 = vmatpush2.bf16.msra.mxu0 0
          %1871 = vmatprep.subr.bf16.mxu0 0
          %1872 = vmatpush2.bf16.msra.mxu0 0
          %1873 = vmatprep.subr.bf16.mxu0 0
          %1874 = vmatpush2.bf16.msra.mxu0 0
          %1875 = vmatprep.subr.bf16.mxu0 0
          %1876 = vmatpush2.bf16.msra.mxu0 0
          %1877 = vmatprep.subr.bf16.mxu0 0
          %1878 = vmatpush2.bf16.msra.mxu0 0
          %1879 = vmatprep.mubr.bf16.mxu0 0
          %1880 = vmatmul.mubr.bf16.gmra.mxu0 %v1845
          %v1881 = vpop.f32.mrf.mxu0
          %v1882 = vadd.f32 %v1830, %v1881
          %v1883 = vpop.f32.mrf.mxu0
          %v1884 = vpop.f32.mrf.mxu0
          %v1885 = vadd.f32 %v1830, %v1884
          %v1886 = vpop.f32.mrf.mxu0
          %1887 = vdwg.mxu0
          %v1888 = vmul.f32 %v1882, 0.5
          %v1889 = vmul.f32 %v1885, 0.5
          %v1890 = vmul.f32 %v1882, %v1674
          %v1891 = vmul.f32 %v1885, %v1674
          %v1892 = verf.f32.pop %v1890
          %v1893 = verf.f32.pop %v1891
          %v1894 = vadd.f32 %v1892, 1.0
          %v1895 = vadd.f32 %v1893, 1.0
          %v1896 = vmul.f32 %v1888, %v1894
          %v1897 = vmul.f32 %v1889, %v1895
          %v1898 = vld [vmem:[%s18] sm:$0x1]
          %v1899 = vld [vmem:[%s19] sm:$0x1]
          %v1900 = vsel %vm923, %v1896, 0.0
          %1901 = vadd.xlane.f32.xlu0 %v1900
          %v1902 = vpop.xlane.xlu0 %1901
          %v1903 = vsel %vm923, %v1897, 0.0
          %1904 = vadd.xlane.f32.xlu0 %v1903
          %v1905 = vpop.xlane.xlu0 %1904
          %v1906 = vmul.f32 %v1902, %v1567
          %v1907 = vmul.f32 %v1905, %v1567
          %v1908 = vsub.f32 %v1896, %v1906
          %v1909 = vsub.f32 %v1897, %v1907
          %v1910 = vmul.f32 %v1908, %v1908
          %v1911 = vmul.f32 %v1909, %v1909
          %v1912 = vsel %vm923, %v1910, 0.0
          %1913 = vadd.xlane.f32.xlu0 %v1912
          %v1914 = vpop.xlane.xlu0 %1913
          %v1915 = vsel %vm923, %v1911, 0.0
          %1916 = vadd.xlane.f32.xlu0 %v1915
          %v1917 = vpop.xlane.xlu0 %1916
          %v1918 = vmul.f32 %v1914, %v1567
          %v1919 = vmul.f32 %v1917, %v1567
          %v1920 = vadd.f32 %v1918, 1e-12
          %v1921 = vadd.f32 %v1919, 1e-12
          %v1922 = vrsqrt.pop %v1920
          %v1923 = vrsqrt.pop %v1921
          %v1924 = vmul.f32 %v1908, %v1922
          %v1925 = vmul.f32 %v1909, %v1923
          %v1927 = vlaneseq
          %v1928 = vshrl.u32 %v1927, 7
          %v1929 = vsub.s32 0, %v1928
          %v1930 = vrot.slane %v1898, %v1929
          %v1932 = vmul.f32 %v1924, %v1930
          %v1933 = vmul.f32 %v1925, %v1930
          %v1935 = vlaneseq
          %v1936 = vshrl.u32 %v1935, 7
          %v1937 = vsub.s32 0, %v1936
          %v1938 = vrot.slane %v1899, %v1937
          %v1940 = vadd.f32 %v1932, %v1938
          %v1941 = vadd.f32 %v1933, %v1938
          %v1942 = vpack.c.bf16 %v1941, %v1940
          %v1943 = vld [vmem:[%s20] sm:$0xf]
          %v1944 = vld [vmem:[%s20 + $0x4] sm:$0xf]
          %v1945 = vld [vmem:[%s20 + $0x8] sm:$0xf]
          %v1946 = vld [vmem:[%s20 + $0xc] sm:$0xf]
          %v1947 = vld [vmem:[%s20 + $0x10] sm:$0xf]
          %v1948 = vld [vmem:[%s20 + $0x14] sm:$0xf]
          %v1949 = vld [vmem:[%s20 + $0x18] sm:$0xf]
          %v1950 = vld [vmem:[%s20 + $0x1c] sm:$0xf]
          %v1951 = vld [vmem:[%s20 + $0x20] sm:$0xf]
          %v1952 = vld [vmem:[%s20 + $0x24] sm:$0xf]
          %v1953 = vld [vmem:[%s20 + $0x28] sm:$0xf]
          %v1954 = vld [vmem:[%s20 + $0x2c] sm:$0xf]
          %v1955 = vld [vmem:[%s20 + $0x30] sm:$0xf]
          %v1956 = vld [vmem:[%s20 + $0x34] sm:$0xf]
          %v1957 = vld [vmem:[%s20 + $0x38] sm:$0xf]
          %v1958 = vld [vmem:[%s20 + $0x3c] sm:$0xf]
          %v1959 = vld [vmem:[%s21] sm:$0x1]
          %v1961 = vlaneseq
          %v1962 = vshrl.u32 %v1961, 7
          %v1963 = vsub.s32 0, %v1962
          %v1964 = vrot.slane %v1959, %v1963
          %v1982 = vunpack.c.l.b16 %v1943
          %v1983 = vunpack.c.l.b16 %v1944
          %v1984 = vunpack.c.l.b16 %v1945
          %v1985 = vunpack.c.l.b16 %v1946
          %v1986 = vunpack.c.l.b16 %v1947
          %v1987 = vunpack.c.l.b16 %v1948
          %v1988 = vunpack.c.l.b16 %v1949
          %v1989 = vunpack.c.l.b16 %v1950
          %v1990 = vunpack.c.l.b16 %v1951
          %v1991 = vunpack.c.l.b16 %v1952
          %v1992 = vunpack.c.l.b16 %v1953
          %v1993 = vunpack.c.l.b16 %v1954
          %v1994 = vunpack.c.l.b16 %v1955
          %v1995 = vunpack.c.l.b16 %v1956
          %v1996 = vunpack.c.l.b16 %v1957
          %v1997 = vunpack.c.l.b16 %v1958
          %v1998 = vpack.c.b16 %v1983, %v1982
          %v1999 = vpack.c.b16 %v1985, %v1984
          %v2000 = vpack.c.b16 %v1987, %v1986
          %v2001 = vpack.c.b16 %v1989, %v1988
          %v2002 = vpack.c.b16 %v1991, %v1990
          %v2003 = vpack.c.b16 %v1993, %v1992
          %v2004 = vpack.c.b16 %v1995, %v1994
          %v2005 = vpack.c.b16 %v1997, %v1996
          %v2007 = vsel %vm923, %v1942, 0
          %v2010 = vsel %vm923, %v1998, 0
          %v2013 = vsel %vm923, %v1999, 0
          %v2016 = vsel %vm923, %v2000, 0
          %v2019 = vsel %vm923, %v2001, 0
          %v2022 = vsel %vm923, %v2002, 0
          %v2025 = vsel %vm923, %v2003, 0
          %v2028 = vsel %vm923, %v2004, 0
          %v2031 = vsel %vm923, %v2005, 0
          %2033 = vmatprep.subr.bf16.mxu0 0
          %2034 = vmatpush1.bf16.xpose.msra.mxu0 %v2031
          %2035 = vmatprep.subr.bf16.mxu0 0
          %2036 = vmatpush1.bf16.xpose.msra.mxu0 %v2028
          %2037 = vmatprep.subr.bf16.mxu0 0
          %2038 = vmatpush1.bf16.xpose.msra.mxu0 %v2025
          %2039 = vmatprep.subr.bf16.mxu0 0
          %2040 = vmatpush1.bf16.xpose.msra.mxu0 %v2022
          %2041 = vmatprep.subr.bf16.mxu0 0
          %2042 = vmatpush1.bf16.xpose.msra.mxu0 %v2019
          %2043 = vmatprep.subr.bf16.mxu0 0
          %2044 = vmatpush1.bf16.xpose.msra.mxu0 %v2016
          %2045 = vmatprep.subr.bf16.mxu0 0
          %2046 = vmatpush1.bf16.xpose.msra.mxu0 %v2013
          %2047 = vmatprep.subr.bf16.mxu0 0
          %2048 = vmatpush1.bf16.xpose.msra.mxu0 %v2010
          %2049 = vmatprep.subr.bf16.mxu0 0
          %2050 = vmatpush2.bf16.xpose.msra.mxu0 0
          %2051 = vmatprep.subr.bf16.mxu0 0
          %2052 = vmatpush2.bf16.xpose.msra.mxu0 0
          %2053 = vmatprep.subr.bf16.mxu0 0
          %2054 = vmatpush2.bf16.xpose.msra.mxu0 0
          %2055 = vmatprep.subr.bf16.mxu0 0
          %2056 = vmatpush2.bf16.xpose.msra.mxu0 0
          %2057 = vmatprep.subr.bf16.mxu0 0
          %2058 = vmatpush2.bf16.xpose.msra.mxu0 0
          %2059 = vmatprep.subr.bf16.mxu0 0
          %2060 = vmatpush2.bf16.xpose.msra.mxu0 0
          %2061 = vmatprep.subr.bf16.mxu0 0
          %2062 = vmatpush2.bf16.xpose.msra.mxu0 0
          %2063 = vmatprep.subr.bf16.mxu0 0
          %2064 = vmatpush2.bf16.xpose.msra.mxu0 0
          %2065 = vmatprep.mubr.bf16.mxu0 0
          %2066 = vmatmul.mubr.bf16.gmra.mxu0 %v2007
          %v2067 = vpop.f32.mrf.mxu0
          %v2068 = vadd.f32 %v1964, %v2067
          %v2069 = vpop.f32.mrf.mxu0
          %v2070 = vpop.f32.mrf.mxu0
          %v2071 = vadd.f32 %v1964, %v2070
          %v2072 = vpop.f32.mrf.mxu0
          %2073 = vdwg.mxu0
          %2074 = vst [vmem:[#allocation3] sm:$0xff] %v2068
          %2075 = vst [vmem:[#allocation3 + $0x8] sm:$0xff] %v2071
        $region116: #{tpu_custom_call.1} parent=107 // pred_fallthru
          _
        // Predicated region
        $region117: #{tpu_custom_call.1} parent=107 // pred_check
          %p2076 = pneg %p569
        $region118: #{tpu_custom_call.1} parent=107 // pred_check_branch
          %2078 = sbr.rel (%p2076) target = $region120
        $region119: #{tpu_custom_call.1} parent=107 // pred_region
          %s2080 = ssub.s32 256, 256
          %2081 = vsyncadd [#allocation4], %s2080
          %s2082 = sshll.u32 [#allocation3], 4
          %s2083 = int_to_ptr.vmem [resolvable:$true] %s2082
          %2088 = dma.vmem_to_hbm [thread:$0]  %s2083, 256, %s22, [#allocation4], 128, 128, 8
        $region120: #{tpu_custom_call.1} parent=107 // pred_fallthru
          _
        // Predicated region
        $region121: #{tpu_custom_call.1} parent=107 // pred_check
          %p2089 = pneg %p569
        $region122: #{tpu_custom_call.1} parent=107 // pred_check_branch
          %2091 = sbr.rel (%p2089) target = $region124
        $region123: #{tpu_custom_call.1} parent=107 // pred_region
          %2092 = dma.done [#allocation4], 256
        $region124: #{tpu_custom_call.1} parent=107 // pred_fallthru
          _
      $region108: #{tpu_custom_call.1} parent=5 // pred_fallthru
        _
      %p2093 = scmp.le.s32.totalorder 2, %s29
      // Predicated region
      $region125: #{tpu_custom_call.1} parent=5 // pred_check
        %p2094 = pneg %p2093
      $region126: #{tpu_custom_call.1} parent=5 // pred_check_branch
        %2096 = sbr.rel (%p2094) target = $region128
      $region127: #{tpu_custom_call.1} parent=5 // pred_region
        %s2097 = ssub.s32 %s29, 2
      $region128: #{tpu_custom_call.1} parent=5 // pred_fallthru
        _
    $region6: #{tpu_custom_call.1} parent=1 // loop_footer
      %s33 = sadd.s32 1, %s29
    $region7: #{tpu_custom_call.1} parent=1 // loop_footer_branch
      %28 = sbr.rel target = $region3
    $region8: #{tpu_custom_call.1} parent=1 // loop_exit
      _
    %2098 = vsyncpa [#allocation4], 1
    %s2099 = scalar_lea.sflag [#allocation4], 1
    %2100 = vsyncpa %s2099, 1

</llo_original>
